<compile_context>
chip_gen: v5e
topology: v5e:2x2
jax: 0.10.0
libtpu: 0.0.40
codegen_flags: <defaults>
</compile_context>

<pallas_src>
import numpy as np
import jax
import jax.numpy as jnp
from jax.experimental import pallas as pl
from jax.experimental.pallas import tpu as pltpu


# ---------------- fused Pallas kernel ----------------

def _fused_passthrough_kernel(x_ref, y_ref, wa_ref, wb_ref, w2a_ref, w2b_ref,
                              cs_ref, rs_ref, b1_ref, b2_ref, o_ref):
    """One grid step == one batch image, fully fused forward pass.

    x_ref  : [1, H, W/2, 128] bf16  NHWC x with horizontally-adjacent pixel pairs packed in lanes
    y_ref  : [1, Hh*Wh, 128]  bf16  NHWC y flattened over space
    wa_ref : [128, 64] bf16         block-diag conv1 weights (even full-res rows)
    wb_ref : [128, 64] bf16         block-diag conv1 weights (odd full-res rows)
    w2a_ref: [9, 64, 128] bf16      conv2 taps acting on the space-to-depth channels
    w2b_ref: [9, 128, 128] bf16     conv2 taps acting on the y channels
    cs_ref : [2, HW, HW] bf16       column-shift (replicate clamp) selection matrices (dc=-1,+1)
    rs_ref : [2, HW, HW] f32        row-shift    (replicate clamp) selection matrices (dr=-1,+1)
    b1_ref : [1, 64] f32, b2_ref: [1, 128] f32
    o_ref  : [1, HW, 128] f32
    """
    _, H, Wh, C2 = x_ref.shape
    Hh = H // 2
    HW = Hh * Wh

    # ---- conv1 (1x1) + folded BN + ReLU, fused with space-to-depth ----
    x = x_ref[0].reshape(Hh, 2, Wh, C2)
    xe = x[:, 0:1].reshape(HW, C2)        # even full-res rows: [x[2r,2c,:], x[2r,2c+1,:]]
    xo = x[:, 1:2].reshape(HW, C2)        # odd  full-res rows
    s = jnp.dot(xe, wa_ref[...], preferred_element_type=jnp.float32)
    s = s + jnp.dot(xo, wb_ref[...], preferred_element_type=jnp.float32)
    s2d = jnp.maximum(s + b1_ref[...], 0.0).astype(jnp.bfloat16)     # [HW, 64]

    yv = y_ref[0]                                                     # [HW, 128] bf16

    # ---- column-shifted (replicate-clamped) copies via exact 0/1 selection matmuls ----
    s_m1 = jnp.dot(cs_ref[0], s2d, preferred_element_type=jnp.float32).astype(jnp.bfloat16)
    s_p1 = jnp.dot(cs_ref[1], s2d, preferred_element_type=jnp.float32).astype(jnp.bfloat16)
    y_m1 = jnp.dot(cs_ref[0], yv, preferred_element_type=jnp.float32).astype(jnp.bfloat16)
    y_p1 = jnp.dot(cs_ref[1], yv, preferred_element_type=jnp.float32).astype(jnp.bfloat16)
    sc = (s_m1, s2d, s_p1)
    yc = (y_m1, yv, y_p1)

    # ---- conv2 (3x3, replicate pad) + folded BN + ReLU ----
    acc = jnp.zeros((HW, 128), jnp.float32)
    for dr_idx in range(3):                      # dr = dr_idx - 1
        t_dr = jnp.zeros((HW, 128), jnp.float32)
        for dc_idx in range(3):                  # dc = dc_idx - 1
            t = dr_idx * 3 + dc_idx              # kh-major tap index == w2.reshape(9,192,128) order
            t_dr = t_dr + jnp.dot(sc[dc_idx], w2a_ref[t], preferred_element_type=jnp.float32)
            t_dr = t_dr + jnp.dot(yc[dc_idx], w2b_ref[t], preferred_element_type=jnp.float32)
        if dr_idx == 1:
            acc = acc + t_dr
        else:
            acc = acc + jnp.dot(rs_ref[0 if dr_idx == 0 else 1], t_dr,
                                preferred_element_type=jnp.float32)

    o_ref[0] = jnp.maximum(acc + b2_ref[...], 0.0).astype(o_ref.dtype)


# ---------------- static helpers ----------------

def _shift_selection_matrices(Hh, Wh):
    """Exact 0/1 matrices realizing replicate-clamped +-1 shifts on the flattened spatial dim."""
    HW = Hh * Wh

    def col_mat(dc):
        m = np.zeros((HW, HW), np.float32)
        for r in range(Hh):
            for c in range(Wh):
                m[r * Wh + c, r * Wh + min(max(c + dc, 0), Wh - 1)] = 1.0
        return m

    def row_mat(dr):
        m = np.zeros((HW, HW), np.float32)
        for r in range(Hh):
            for c in range(Wh):
                m[r * Wh + c, min(max(r + dr, 0), Hh - 1) * Wh + c] = 1.0
        return m

    cs = jnp.asarray(np.stack([col_mat(-1), col_mat(+1)]), jnp.bfloat16)
    rs = jnp.asarray(np.stack([row_mat(-1), row_mat(+1)]), jnp.float32)
    return cs, rs


# ---------------- module forward (Pallas) ----------------

def passthrough_forward(x_nchw, y_nchw, params):
    wa, wb, w2a, w2b, b1v, b2v = params
    B, Cx, H, W = x_nchw.shape
    assert Cx == 64 and H % 2 == 0 and W % 2 == 0
    Hh, Wh = H // 2, W // 2
    HW = Hh * Wh
    assert y_nchw.shape == (B, 128, Hh, Wh)

    # TODO(synk): the NCHW<->NHWC transposes below are the only remaining XLA glue; they exist
    # solely to preserve the PyTorch NCHW interface (the kernel itself is channels-last).
    xr = jnp.transpose(x_nchw, (0, 2, 3, 1)).reshape(B, H, Wh, 2 * Cx).astype(jnp.bfloat16)
    yr = jnp.transpose(y_nchw, (0, 2, 3, 1)).reshape(B, HW, 128).astype(jnp.bfloat16)
    cs, rs = _shift_selection_matrices(Hh, Wh)

    out_flat = pl.pallas_call(
        _fused_passthrough_kernel,
        out_shape=jax.ShapeDtypeStruct((B, HW, 128), jnp.float32),
        grid_spec=pltpu.PrefetchScalarGridSpec(
            num_scalar_prefetch=0,
            grid=(B,),
            in_specs=[
                pl.BlockSpec((1, H, Wh, 2 * Cx), lambda b: (b, 0, 0, 0)),
                pl.BlockSpec((1, HW, 128), lambda b: (b, 0, 0)),
                pl.BlockSpec((2 * Cx, 64), lambda b: (0, 0)),
                pl.BlockSpec((2 * Cx, 64), lambda b: (0, 0)),
                pl.BlockSpec((9, 64, 128), lambda b: (0, 0, 0)),
                pl.BlockSpec((9, 128, 128), lambda b: (0, 0, 0)),
                pl.BlockSpec((2, HW, HW), lambda b: (0, 0, 0)),
                pl.BlockSpec((2, HW, HW), lambda b: (0, 0, 0)),
                pl.BlockSpec((1, 64), lambda b: (0, 0)),
                pl.BlockSpec((1, 128), lambda b: (0, 0)),
            ],
            out_specs=pl.BlockSpec((1, HW, 128), lambda b: (b, 0, 0)),
        ),
        compiler_params=pltpu.CompilerParams(
            dimension_semantics=("parallel",),
        ),
    )(xr, yr, wa, wb, w2a, w2b, cs, rs, b1v, b2v)

    out_nhwc = out_flat.reshape(B, Hh, Wh, 128)
    return jnp.transpose(out_nhwc, (0, 3, 1, 2))  # back to NCHW [B, 128, H/2, W/2]


# ---------------- parameters (deterministic, synthetic) ----------------

def _bn_fold(c):
    # Folded eval-mode BatchNorm: scale = gamma/sqrt(var+eps), bias = beta - mean*scale
    gamma = 1.0 + 0.01 * jnp.arange(c, dtype=jnp.float32)
    beta = 0.01 * jnp.arange(c, dtype=jnp.float32)
    mean = 0.001 * jnp.arange(c, dtype=jnp.float32)
    var = 1.0 + 0.001 * jnp.arange(c, dtype=jnp.float32)
    eps = 1e-5
    scale = gamma / jnp.sqrt(var + eps)
    bias = beta - mean * scale
    return scale, bias


def init_raw_params():
    key = jax.random.PRNGKey(42)
    k1, k2 = jax.random.split(key)
    w1 = 0.05 * jax.random.normal(k1, (64, 16), jnp.float32)          # conv1 1x1: [Cin, Cout]
    w2 = 0.02 * jax.random.normal(k2, (3, 3, 192, 128), jnp.float32)  # conv2 3x3: [kh, kw, Cin, Cout]
    s1, b1 = _bn_fold(16)
    s2, b2 = _bn_fold(128)
    return w1, s1, b1, w2, s2, b2


def prepare_params(raw):
    """Fold eval-mode BN into the conv weights and build the fused-kernel operands (bf16)."""
    w1, s1, b1, w2, s2, b2 = raw
    w1f = w1 * s1[None, :]                      # relu((xW)s + b) == relu(x(Ws) + b)
    w2f = w2 * s2[None, None, None, :]

    # Block-diagonal conv1 weights that also perform space-to-depth:
    #   xe[r,c] = [x[2r,2c,:],   x[2r,2c+1,:]]   (128-wide)
    #   xo[r,c] = [x[2r+1,2c,:], x[2r+1,2c+1,:]]
    #   s2d[r,c] = relu(xe@Wa + xo@Wb + tile(b1,4))  -> torch.cat channel order
    wa = jnp.zeros((128, 64), jnp.float32)
    wa = wa.at[0:64, 0:16].set(w1f).at[64:128, 16:32].set(w1f)
    wb = jnp.zeros((128, 64), jnp.float32)
    wb = wb.at[0:64, 32:48].set(w1f).at[64:128, 48:64].set(w1f)
    b1v = jnp.tile(b1, 4).reshape(1, 64)

    w2t = w2f.reshape(9, 192, 128)              # kh-major taps
    w2a = w2t[:, :64, :]                        # acts on the s2d channels of z
    w2b = w2t[:, 64:, :]                        # acts on the y channels of z
    b2v = b2.reshape(1, 128)

    return (wa.astype(jnp.bfloat16), wb.astype(jnp.bfloat16),
            w2a.astype(jnp.bfloat16), w2b.astype(jnp.bfloat16), b1v, b2v)


# ---------------- pure-JAX reference ----------------

def reference_forward(x_nchw, y_nchw, raw):
    """Reference implementation with the same bf16 quantization points as the kernel."""
    w1, s1, b1, w2, s2, b2 = raw
    f32 = jnp.float32
    q = lambda a: a.astype(jnp.bfloat16).astype(f32)
    w1f = q(w1 * s1[None, :])
    w2f = q(w2 * s2[None, None, None, :])
    x = q(jnp.transpose(x_nchw, (0, 2, 3, 1)))
    y = q(jnp.transpose(y_nchw, (0, 2, 3, 1)))
    B, H, W, _ = x.shape
    Hh, Wh = H // 2, W // 2

    hp = jax.lax.Precision.HIGHEST
    h1 = jnp.maximum(jnp.einsum("bhwc,cd->bhwd", x, w1f, precision=hp) + b1, 0.0)
    h1 = q(h1)
    s2d = jnp.concatenate([h1[:, ::2, ::2], h1[:, ::2, 1::2],
                           h1[:, 1::2, ::2], h1[:, 1::2, 1::2]], axis=-1)
    z = jnp.concatenate([s2d, y], axis=-1)                      # [B, Hh, Wh, 192]
    zp = jnp.pad(z, ((0, 0), (1, 1), (1, 1), (0, 0)), mode="edge")
    w2t = w2f.reshape(9, 192, 128)
    out = jnp.zeros((B, Hh, Wh, 128), f32)
    for kh in range(3):
        for kw in range(3):
            out = out + jnp.einsum("bhwc,cd->bhwd",
                                   zp[:, kh:kh + Hh, kw:kw + Wh, :],
                                   w2t[kh * 3 + kw], precision=hp)
    out = jnp.maximum(out + b2, 0.0)
    return jnp.transpose(out, (0, 3, 1, 2))


if __name__ == "__main__":
    key = jax.random.PRNGKey(0)
    kx, ky = jax.random.split(key)
    B, H, W = 2, 16, 16
    x = jax.random.normal(kx, (B, 64, H, W), jnp.float32)             # NCHW
    y = jax.random.normal(ky, (B, 128, H // 2, W // 2), jnp.float32)  # NCHW

    raw = init_raw_params()
    params = prepare_params(raw)

    fwd = jax.jit(passthrough_forward)
    out = jax.block_until_ready(fwd(x, y, params))
    assert out.shape == (B, 128, H // 2, W // 2), out.shape
    assert bool(jnp.all(out >= 0.0))                                  # ReLU output

    ref = reference_forward(x, y, raw)
    max_err = float(jnp.max(jnp.abs(out - ref)))
    assert max_err < 2e-2, f"mismatch vs reference: max abs err = {max_err}"
    print("KERNEL_OK")
</pallas_src>

<mosaic_0001>
module attributes {stable_mosaic.version = 11 : i64} {
  func.func @_fused_passthrough_kernel(%arg0: i32, %arg1: memref<1x16x8x128xbf16, #tpu.memory_space<vmem>>, %arg2: memref<1x64x128xbf16, #tpu.memory_space<vmem>>, %arg3: memref<128x64xbf16, #tpu.memory_space<vmem>>, %arg4: memref<128x64xbf16, #tpu.memory_space<vmem>>, %arg5: memref<9x64x128xbf16, #tpu.memory_space<vmem>>, %arg6: memref<9x128x128xbf16, #tpu.memory_space<vmem>>, %arg7: memref<2x64x64xbf16, #tpu.memory_space<vmem>>, %arg8: memref<2x64x64xf32, #tpu.memory_space<vmem>>, %arg9: memref<1x64xf32, #tpu.memory_space<vmem>>, %arg10: memref<1x128xf32, #tpu.memory_space<vmem>>, %arg11: memref<1x64x128xf32, #tpu.memory_space<vmem>>) attributes {dimension_semantics = [#tpu.dimension_semantics<parallel>], iteration_bounds = array<i64: 2>, scalar_prefetch = 0 : i64, scratch_operands = 0 : i64, tpu.core_type = #tpu.core_type<tc>, window_params = [{transform_indices = @transform_0, window_bounds = array<i64: 1, 16, 8, 128>}, {transform_indices = @transform_1, window_bounds = array<i64: 1, 64, 128>}, {pipeline_mode = #tpu.pipeline_mode<synchronous>, transform_indices = @transform_2, window_bounds = array<i64: 128, 64>}, {pipeline_mode = #tpu.pipeline_mode<synchronous>, transform_indices = @transform_3, window_bounds = array<i64: 128, 64>}, {pipeline_mode = #tpu.pipeline_mode<synchronous>, transform_indices = @transform_4, window_bounds = array<i64: 9, 64, 128>}, {pipeline_mode = #tpu.pipeline_mode<synchronous>, transform_indices = @transform_5, window_bounds = array<i64: 9, 128, 128>}, {pipeline_mode = #tpu.pipeline_mode<synchronous>, transform_indices = @transform_6, window_bounds = array<i64: 2, 64, 64>}, {pipeline_mode = #tpu.pipeline_mode<synchronous>, transform_indices = @transform_7, window_bounds = array<i64: 2, 64, 64>}, {pipeline_mode = #tpu.pipeline_mode<synchronous>, transform_indices = @transform_8, window_bounds = array<i64: 1, 64>}, {pipeline_mode = #tpu.pipeline_mode<synchronous>, transform_indices = @transform_9, window_bounds = array<i64: 1, 128>}, {transform_indices = @transform_10, window_bounds = array<i64: 1, 64, 128>}]} {
    %c0 = arith.constant 0 : index
    %c0_0 = arith.constant 0 : index
    %c0_1 = arith.constant 0 : index
    %c0_2 = arith.constant 0 : index
    %0 = vector.load %arg1[%c0, %c0_0, %c0_1, %c0_2] : memref<1x16x8x128xbf16, #tpu.memory_space<vmem>>, vector<1x16x8x128xbf16>
    %1 = vector.shape_cast %0 : vector<1x16x8x128xbf16> to vector<16x8x128xbf16>
    %2 = vector.shape_cast %1 : vector<16x8x128xbf16> to vector<8x2x8x128xbf16>
    %3 = vector.extract_strided_slice %2 {offsets = [0, 0, 0, 0], sizes = [8, 1, 8, 128], strides = [1, 1, 1, 1]} : vector<8x2x8x128xbf16> to vector<8x1x8x128xbf16>
    %4 = vector.shape_cast %3 : vector<8x1x8x128xbf16> to vector<64x128xbf16>
    %5 = vector.extract_strided_slice %2 {offsets = [0, 1, 0, 0], sizes = [8, 1, 8, 128], strides = [1, 1, 1, 1]} : vector<8x2x8x128xbf16> to vector<8x1x8x128xbf16>
    %6 = vector.shape_cast %5 : vector<8x1x8x128xbf16> to vector<64x128xbf16>
    %c0_3 = arith.constant 0 : index
    %c0_4 = arith.constant 0 : index
    %7 = vector.load %arg3[%c0_3, %c0_4] : memref<128x64xbf16, #tpu.memory_space<vmem>>, vector<128x64xbf16>
    %cst = arith.constant dense<0.000000e+00> : vector<64x64xf32>
    %8 = tpu.matmul %4, %7, %cst {dimension_numbers = #tpu.dot_dimension_numbers<[1], [0], [0], [1], [0, 0, 1, 1], [], []>} : vector<64x128xbf16>, vector<128x64xbf16>, vector<64x64xf32> -> vector<64x64xf32>
    %c0_5 = arith.constant 0 : index
    %c0_6 = arith.constant 0 : index
    %9 = vector.load %arg4[%c0_5, %c0_6] : memref<128x64xbf16, #tpu.memory_space<vmem>>, vector<128x64xbf16>
    %cst_7 = arith.constant dense<0.000000e+00> : vector<64x64xf32>
    %10 = tpu.matmul %6, %9, %cst_7 {dimension_numbers = #tpu.dot_dimension_numbers<[1], [0], [0], [1], [0, 0, 1, 1], [], []>} : vector<64x128xbf16>, vector<128x64xbf16>, vector<64x64xf32> -> vector<64x64xf32>
    %11 = arith.addf %8, %10 : vector<64x64xf32>
    %c0_8 = arith.constant 0 : index
    %c0_9 = arith.constant 0 : index
    %12 = vector.load %arg9[%c0_8, %c0_9] : memref<1x64xf32, #tpu.memory_space<vmem>>, vector<1x64xf32>
    %13 = vector.broadcast %12 : vector<1x64xf32> to vector<64x64xf32>
    %14 = arith.addf %11, %13 : vector<64x64xf32>
    %cst_10 = arith.constant 0.000000e+00 : f32
    %15 = vector.broadcast %cst_10 : f32 to vector<64x64xf32>
    %16 = arith.maximumf %14, %15 : vector<64x64xf32>
    %17 = arith.truncf %16 : vector<64x64xf32> to vector<64x64xbf16>
    %c0_11 = arith.constant 0 : index
    %c0_12 = arith.constant 0 : index
    %c0_13 = arith.constant 0 : index
    %18 = vector.load %arg2[%c0_11, %c0_12, %c0_13] : memref<1x64x128xbf16, #tpu.memory_space<vmem>>, vector<1x64x128xbf16>
    %19 = vector.shape_cast %18 : vector<1x64x128xbf16> to vector<64x128xbf16>
    %c0_14 = arith.constant 0 : index
    %c0_15 = arith.constant 0 : index
    %c0_16 = arith.constant 0 : index
    %20 = vector.load %arg7[%c0_14, %c0_15, %c0_16] : memref<2x64x64xbf16, #tpu.memory_space<vmem>>, vector<1x64x64xbf16>
    %21 = vector.shape_cast %20 : vector<1x64x64xbf16> to vector<64x64xbf16>
    %cst_17 = arith.constant dense<0.000000e+00> : vector<64x64xf32>
    %22 = tpu.matmul %21, %17, %cst_17 {dimension_numbers = #tpu.dot_dimension_numbers<[1], [0], [0], [1], [0, 0, 1, 1], [], []>} : vector<64x64xbf16>, vector<64x64xbf16>, vector<64x64xf32> -> vector<64x64xf32>
    %23 = arith.truncf %22 : vector<64x64xf32> to vector<64x64xbf16>
    %c1 = arith.constant 1 : index
    %c0_18 = arith.constant 0 : index
    %c0_19 = arith.constant 0 : index
    %24 = vector.load %arg7[%c1, %c0_18, %c0_19] : memref<2x64x64xbf16, #tpu.memory_space<vmem>>, vector<1x64x64xbf16>
    %25 = vector.shape_cast %24 : vector<1x64x64xbf16> to vector<64x64xbf16>
    %cst_20 = arith.constant dense<0.000000e+00> : vector<64x64xf32>
    %26 = tpu.matmul %25, %17, %cst_20 {dimension_numbers = #tpu.dot_dimension_numbers<[1], [0], [0], [1], [0, 0, 1, 1], [], []>} : vector<64x64xbf16>, vector<64x64xbf16>, vector<64x64xf32> -> vector<64x64xf32>
    %27 = arith.truncf %26 : vector<64x64xf32> to vector<64x64xbf16>
    %c0_21 = arith.constant 0 : index
    %c0_22 = arith.constant 0 : index
    %c0_23 = arith.constant 0 : index
    %28 = vector.load %arg7[%c0_21, %c0_22, %c0_23] : memref<2x64x64xbf16, #tpu.memory_space<vmem>>, vector<1x64x64xbf16>
    %29 = vector.shape_cast %28 : vector<1x64x64xbf16> to vector<64x64xbf16>
    %cst_24 = arith.constant dense<0.000000e+00> : vector<64x128xf32>
    %30 = tpu.matmul %29, %19, %cst_24 {dimension_numbers = #tpu.dot_dimension_numbers<[1], [0], [0], [1], [0, 0, 1, 1], [], []>} : vector<64x64xbf16>, vector<64x128xbf16>, vector<64x128xf32> -> vector<64x128xf32>
    %31 = arith.truncf %30 : vector<64x128xf32> to vector<64x128xbf16>
    %c1_25 = arith.constant 1 : index
    %c0_26 = arith.constant 0 : index
    %c0_27 = arith.constant 0 : index
    %32 = vector.load %arg7[%c1_25, %c0_26, %c0_27] : memref<2x64x64xbf16, #tpu.memory_space<vmem>>, vector<1x64x64xbf16>
    %33 = vector.shape_cast %32 : vector<1x64x64xbf16> to vector<64x64xbf16>
    %cst_28 = arith.constant dense<0.000000e+00> : vector<64x128xf32>
    %34 = tpu.matmul %33, %19, %cst_28 {dimension_numbers = #tpu.dot_dimension_numbers<[1], [0], [0], [1], [0, 0, 1, 1], [], []>} : vector<64x64xbf16>, vector<64x128xbf16>, vector<64x128xf32> -> vector<64x128xf32>
    %35 = arith.truncf %34 : vector<64x128xf32> to vector<64x128xbf16>
    %cst_29 = arith.constant 0.000000e+00 : f32
    %36 = vector.broadcast %cst_29 : f32 to vector<64x128xf32>
    %cst_30 = arith.constant 0.000000e+00 : f32
    %37 = vector.broadcast %cst_30 : f32 to vector<64x128xf32>
    %c0_31 = arith.constant 0 : index
    %c0_32 = arith.constant 0 : index
    %c0_33 = arith.constant 0 : index
    %38 = vector.load %arg5[%c0_31, %c0_32, %c0_33] : memref<9x64x128xbf16, #tpu.memory_space<vmem>>, vector<1x64x128xbf16>
    %39 = vector.shape_cast %38 : vector<1x64x128xbf16> to vector<64x128xbf16>
    %cst_34 = arith.constant dense<0.000000e+00> : vector<64x128xf32>
    %40 = tpu.matmul %23, %39, %cst_34 {dimension_numbers = #tpu.dot_dimension_numbers<[1], [0], [0], [1], [0, 0, 1, 1], [], []>} : vector<64x64xbf16>, vector<64x128xbf16>, vector<64x128xf32> -> vector<64x128xf32>
    %41 = arith.addf %37, %40 : vector<64x128xf32>
    %c0_35 = arith.constant 0 : index
    %c0_36 = arith.constant 0 : index
    %c0_37 = arith.constant 0 : index
    %42 = vector.load %arg6[%c0_35, %c0_36, %c0_37] : memref<9x128x128xbf16, #tpu.memory_space<vmem>>, vector<1x128x128xbf16>
    %43 = vector.shape_cast %42 : vector<1x128x128xbf16> to vector<128x128xbf16>
    %cst_38 = arith.constant dense<0.000000e+00> : vector<64x128xf32>
    %44 = tpu.matmul %31, %43, %cst_38 {dimension_numbers = #tpu.dot_dimension_numbers<[1], [0], [0], [1], [0, 0, 1, 1], [], []>} : vector<64x128xbf16>, vector<128x128xbf16>, vector<64x128xf32> -> vector<64x128xf32>
    %45 = arith.addf %41, %44 : vector<64x128xf32>
    %c1_39 = arith.constant 1 : index
    %c0_40 = arith.constant 0 : index
    %c0_41 = arith.constant 0 : index
    %46 = vector.load %arg5[%c1_39, %c0_40, %c0_41] : memref<9x64x128xbf16, #tpu.memory_space<vmem>>, vector<1x64x128xbf16>
    %47 = vector.shape_cast %46 : vector<1x64x128xbf16> to vector<64x128xbf16>
    %cst_42 = arith.constant dense<0.000000e+00> : vector<64x128xf32>
    %48 = tpu.matmul %17, %47, %cst_42 {dimension_numbers = #tpu.dot_dimension_numbers<[1], [0], [0], [1], [0, 0, 1, 1], [], []>} : vector<64x64xbf16>, vector<64x128xbf16>, vector<64x128xf32> -> vector<64x128xf32>
    %49 = arith.addf %45, %48 : vector<64x128xf32>
    %c1_43 = arith.constant 1 : index
    %c0_44 = arith.constant 0 : index
    %c0_45 = arith.constant 0 : index
    %50 = vector.load %arg6[%c1_43, %c0_44, %c0_45] : memref<9x128x128xbf16, #tpu.memory_space<vmem>>, vector<1x128x128xbf16>
    %51 = vector.shape_cast %50 : vector<1x128x128xbf16> to vector<128x128xbf16>
    %cst_46 = arith.constant dense<0.000000e+00> : vector<64x128xf32>
    %52 = tpu.matmul %19, %51, %cst_46 {dimension_numbers = #tpu.dot_dimension_numbers<[1], [0], [0], [1], [0, 0, 1, 1], [], []>} : vector<64x128xbf16>, vector<128x128xbf16>, vector<64x128xf32> -> vector<64x128xf32>
    %53 = arith.addf %49, %52 : vector<64x128xf32>
    %c2 = arith.constant 2 : index
    %c0_47 = arith.constant 0 : index
    %c0_48 = arith.constant 0 : index
    %54 = vector.load %arg5[%c2, %c0_47, %c0_48] : memref<9x64x128xbf16, #tpu.memory_space<vmem>>, vector<1x64x128xbf16>
    %55 = vector.shape_cast %54 : vector<1x64x128xbf16> to vector<64x128xbf16>
    %cst_49 = arith.constant dense<0.000000e+00> : vector<64x128xf32>
    %56 = tpu.matmul %27, %55, %cst_49 {dimension_numbers = #tpu.dot_dimension_numbers<[1], [0], [0], [1], [0, 0, 1, 1], [], []>} : vector<64x64xbf16>, vector<64x128xbf16>, vector<64x128xf32> -> vector<64x128xf32>
    %57 = arith.addf %53, %56 : vector<64x128xf32>
    %c2_50 = arith.constant 2 : index
    %c0_51 = arith.constant 0 : index
    %c0_52 = arith.constant 0 : index
    %58 = vector.load %arg6[%c2_50, %c0_51, %c0_52] : memref<9x128x128xbf16, #tpu.memory_space<vmem>>, vector<1x128x128xbf16>
    %59 = vector.shape_cast %58 : vector<1x128x128xbf16> to vector<128x128xbf16>
    %cst_53 = arith.constant dense<0.000000e+00> : vector<64x128xf32>
    %60 = tpu.matmul %35, %59, %cst_53 {dimension_numbers = #tpu.dot_dimension_numbers<[1], [0], [0], [1], [0, 0, 1, 1], [], []>} : vector<64x128xbf16>, vector<128x128xbf16>, vector<64x128xf32> -> vector<64x128xf32>
    %61 = arith.addf %57, %60 : vector<64x128xf32>
    %c0_54 = arith.constant 0 : index
    %c0_55 = arith.constant 0 : index
    %c0_56 = arith.constant 0 : index
    %62 = vector.load %arg8[%c0_54, %c0_55, %c0_56] : memref<2x64x64xf32, #tpu.memory_space<vmem>>, vector<1x64x64xf32>
    %63 = vector.shape_cast %62 : vector<1x64x64xf32> to vector<64x64xf32>
    %cst_57 = arith.constant dense<0.000000e+00> : vector<64x128xf32>
    %64 = tpu.matmul %63, %61, %cst_57 {dimension_numbers = #tpu.dot_dimension_numbers<[1], [0], [0], [1], [0, 0, 1, 1], [], []>} : vector<64x64xf32>, vector<64x128xf32>, vector<64x128xf32> -> vector<64x128xf32>
    %65 = arith.addf %36, %64 : vector<64x128xf32>
    %cst_58 = arith.constant 0.000000e+00 : f32
    %66 = vector.broadcast %cst_58 : f32 to vector<64x128xf32>
    %c3 = arith.constant 3 : index
    %c0_59 = arith.constant 0 : index
    %c0_60 = arith.constant 0 : index
    %67 = vector.load %arg5[%c3, %c0_59, %c0_60] : memref<9x64x128xbf16, #tpu.memory_space<vmem>>, vector<1x64x128xbf16>
    %68 = vector.shape_cast %67 : vector<1x64x128xbf16> to vector<64x128xbf16>
    %cst_61 = arith.constant dense<0.000000e+00> : vector<64x128xf32>
    %69 = tpu.matmul %23, %68, %cst_61 {dimension_numbers = #tpu.dot_dimension_numbers<[1], [0], [0], [1], [0, 0, 1, 1], [], []>} : vector<64x64xbf16>, vector<64x128xbf16>, vector<64x128xf32> -> vector<64x128xf32>
    %70 = arith.addf %66, %69 : vector<64x128xf32>
    %c3_62 = arith.constant 3 : index
    %c0_63 = arith.constant 0 : index
    %c0_64 = arith.constant 0 : index
    %71 = vector.load %arg6[%c3_62, %c0_63, %c0_64] : memref<9x128x128xbf16, #tpu.memory_space<vmem>>, vector<1x128x128xbf16>
    %72 = vector.shape_cast %71 : vector<1x128x128xbf16> to vector<128x128xbf16>
    %cst_65 = arith.constant dense<0.000000e+00> : vector<64x128xf32>
    %73 = tpu.matmul %31, %72, %cst_65 {dimension_numbers = #tpu.dot_dimension_numbers<[1], [0], [0], [1], [0, 0, 1, 1], [], []>} : vector<64x128xbf16>, vector<128x128xbf16>, vector<64x128xf32> -> vector<64x128xf32>
    %74 = arith.addf %70, %73 : vector<64x128xf32>
    %c4 = arith.constant 4 : index
    %c0_66 = arith.constant 0 : index
    %c0_67 = arith.constant 0 : index
    %75 = vector.load %arg5[%c4, %c0_66, %c0_67] : memref<9x64x128xbf16, #tpu.memory_space<vmem>>, vector<1x64x128xbf16>
    %76 = vector.shape_cast %75 : vector<1x64x128xbf16> to vector<64x128xbf16>
    %cst_68 = arith.constant dense<0.000000e+00> : vector<64x128xf32>
    %77 = tpu.matmul %17, %76, %cst_68 {dimension_numbers = #tpu.dot_dimension_numbers<[1], [0], [0], [1], [0, 0, 1, 1], [], []>} : vector<64x64xbf16>, vector<64x128xbf16>, vector<64x128xf32> -> vector<64x128xf32>
    %78 = arith.addf %74, %77 : vector<64x128xf32>
    %c4_69 = arith.constant 4 : index
    %c0_70 = arith.constant 0 : index
    %c0_71 = arith.constant 0 : index
    %79 = vector.load %arg6[%c4_69, %c0_70, %c0_71] : memref<9x128x128xbf16, #tpu.memory_space<vmem>>, vector<1x128x128xbf16>
    %80 = vector.shape_cast %79 : vector<1x128x128xbf16> to vector<128x128xbf16>
    %cst_72 = arith.constant dense<0.000000e+00> : vector<64x128xf32>
    %81 = tpu.matmul %19, %80, %cst_72 {dimension_numbers = #tpu.dot_dimension_numbers<[1], [0], [0], [1], [0, 0, 1, 1], [], []>} : vector<64x128xbf16>, vector<128x128xbf16>, vector<64x128xf32> -> vector<64x128xf32>
    %82 = arith.addf %78, %81 : vector<64x128xf32>
    %c5 = arith.constant 5 : index
    %c0_73 = arith.constant 0 : index
    %c0_74 = arith.constant 0 : index
    %83 = vector.load %arg5[%c5, %c0_73, %c0_74] : memref<9x64x128xbf16, #tpu.memory_space<vmem>>, vector<1x64x128xbf16>
    %84 = vector.shape_cast %83 : vector<1x64x128xbf16> to vector<64x128xbf16>
    %cst_75 = arith.constant dense<0.000000e+00> : vector<64x128xf32>
    %85 = tpu.matmul %27, %84, %cst_75 {dimension_numbers = #tpu.dot_dimension_numbers<[1], [0], [0], [1], [0, 0, 1, 1], [], []>} : vector<64x64xbf16>, vector<64x128xbf16>, vector<64x128xf32> -> vector<64x128xf32>
    %86 = arith.addf %82, %85 : vector<64x128xf32>
    %c5_76 = arith.constant 5 : index
    %c0_77 = arith.constant 0 : index
    %c0_78 = arith.constant 0 : index
    %87 = vector.load %arg6[%c5_76, %c0_77, %c0_78] : memref<9x128x128xbf16, #tpu.memory_space<vmem>>, vector<1x128x128xbf16>
    %88 = vector.shape_cast %87 : vector<1x128x128xbf16> to vector<128x128xbf16>
    %cst_79 = arith.constant dense<0.000000e+00> : vector<64x128xf32>
    %89 = tpu.matmul %35, %88, %cst_79 {dimension_numbers = #tpu.dot_dimension_numbers<[1], [0], [0], [1], [0, 0, 1, 1], [], []>} : vector<64x128xbf16>, vector<128x128xbf16>, vector<64x128xf32> -> vector<64x128xf32>
    %90 = arith.addf %86, %89 : vector<64x128xf32>
    %91 = arith.addf %65, %90 : vector<64x128xf32>
    %cst_80 = arith.constant 0.000000e+00 : f32
    %92 = vector.broadcast %cst_80 : f32 to vector<64x128xf32>
    %c6 = arith.constant 6 : index
    %c0_81 = arith.constant 0 : index
    %c0_82 = arith.constant 0 : index
    %93 = vector.load %arg5[%c6, %c0_81, %c0_82] : memref<9x64x128xbf16, #tpu.memory_space<vmem>>, vector<1x64x128xbf16>
    %94 = vector.shape_cast %93 : vector<1x64x128xbf16> to vector<64x128xbf16>
    %cst_83 = arith.constant dense<0.000000e+00> : vector<64x128xf32>
    %95 = tpu.matmul %23, %94, %cst_83 {dimension_numbers = #tpu.dot_dimension_numbers<[1], [0], [0], [1], [0, 0, 1, 1], [], []>} : vector<64x64xbf16>, vector<64x128xbf16>, vector<64x128xf32> -> vector<64x128xf32>
    %96 = arith.addf %92, %95 : vector<64x128xf32>
    %c6_84 = arith.constant 6 : index
    %c0_85 = arith.constant 0 : index
    %c0_86 = arith.constant 0 : index
    %97 = vector.load %arg6[%c6_84, %c0_85, %c0_86] : memref<9x128x128xbf16, #tpu.memory_space<vmem>>, vector<1x128x128xbf16>
    %98 = vector.shape_cast %97 : vector<1x128x128xbf16> to vector<128x128xbf16>
    %cst_87 = arith.constant dense<0.000000e+00> : vector<64x128xf32>
    %99 = tpu.matmul %31, %98, %cst_87 {dimension_numbers = #tpu.dot_dimension_numbers<[1], [0], [0], [1], [0, 0, 1, 1], [], []>} : vector<64x128xbf16>, vector<128x128xbf16>, vector<64x128xf32> -> vector<64x128xf32>
    %100 = arith.addf %96, %99 : vector<64x128xf32>
    %c7 = arith.constant 7 : index
    %c0_88 = arith.constant 0 : index
    %c0_89 = arith.constant 0 : index
    %101 = vector.load %arg5[%c7, %c0_88, %c0_89] : memref<9x64x128xbf16, #tpu.memory_space<vmem>>, vector<1x64x128xbf16>
    %102 = vector.shape_cast %101 : vector<1x64x128xbf16> to vector<64x128xbf16>
    %cst_90 = arith.constant dense<0.000000e+00> : vector<64x128xf32>
    %103 = tpu.matmul %17, %102, %cst_90 {dimension_numbers = #tpu.dot_dimension_numbers<[1], [0], [0], [1], [0, 0, 1, 1], [], []>} : vector<64x64xbf16>, vector<64x128xbf16>, vector<64x128xf32> -> vector<64x128xf32>
    %104 = arith.addf %100, %103 : vector<64x128xf32>
    %c7_91 = arith.constant 7 : index
    %c0_92 = arith.constant 0 : index
    %c0_93 = arith.constant 0 : index
    %105 = vector.load %arg6[%c7_91, %c0_92, %c0_93] : memref<9x128x128xbf16, #tpu.memory_space<vmem>>, vector<1x128x128xbf16>
    %106 = vector.shape_cast %105 : vector<1x128x128xbf16> to vector<128x128xbf16>
    %cst_94 = arith.constant dense<0.000000e+00> : vector<64x128xf32>
    %107 = tpu.matmul %19, %106, %cst_94 {dimension_numbers = #tpu.dot_dimension_numbers<[1], [0], [0], [1], [0, 0, 1, 1], [], []>} : vector<64x128xbf16>, vector<128x128xbf16>, vector<64x128xf32> -> vector<64x128xf32>
    %108 = arith.addf %104, %107 : vector<64x128xf32>
    %c8 = arith.constant 8 : index
    %c0_95 = arith.constant 0 : index
    %c0_96 = arith.constant 0 : index
    %109 = vector.load %arg5[%c8, %c0_95, %c0_96] : memref<9x64x128xbf16, #tpu.memory_space<vmem>>, vector<1x64x128xbf16>
    %110 = vector.shape_cast %109 : vector<1x64x128xbf16> to vector<64x128xbf16>
    %cst_97 = arith.constant dense<0.000000e+00> : vector<64x128xf32>
    %111 = tpu.matmul %27, %110, %cst_97 {dimension_numbers = #tpu.dot_dimension_numbers<[1], [0], [0], [1], [0, 0, 1, 1], [], []>} : vector<64x64xbf16>, vector<64x128xbf16>, vector<64x128xf32> -> vector<64x128xf32>
    %112 = arith.addf %108, %111 : vector<64x128xf32>
    %c8_98 = arith.constant 8 : index
    %c0_99 = arith.constant 0 : index
    %c0_100 = arith.constant 0 : index
    %113 = vector.load %arg6[%c8_98, %c0_99, %c0_100] : memref<9x128x128xbf16, #tpu.memory_space<vmem>>, vector<1x128x128xbf16>
    %114 = vector.shape_cast %113 : vector<1x128x128xbf16> to vector<128x128xbf16>
    %cst_101 = arith.constant dense<0.000000e+00> : vector<64x128xf32>
    %115 = tpu.matmul %35, %114, %cst_101 {dimension_numbers = #tpu.dot_dimension_numbers<[1], [0], [0], [1], [0, 0, 1, 1], [], []>} : vector<64x128xbf16>, vector<128x128xbf16>, vector<64x128xf32> -> vector<64x128xf32>
    %116 = arith.addf %112, %115 : vector<64x128xf32>
    %c1_102 = arith.constant 1 : index
    %c0_103 = arith.constant 0 : index
    %c0_104 = arith.constant 0 : index
    %117 = vector.load %arg8[%c1_102, %c0_103, %c0_104] : memref<2x64x64xf32, #tpu.memory_space<vmem>>, vector<1x64x64xf32>
    %118 = vector.shape_cast %117 : vector<1x64x64xf32> to vector<64x64xf32>
    %cst_105 = arith.constant dense<0.000000e+00> : vector<64x128xf32>
    %119 = tpu.matmul %118, %116, %cst_105 {dimension_numbers = #tpu.dot_dimension_numbers<[1], [0], [0], [1], [0, 0, 1, 1], [], []>} : vector<64x64xf32>, vector<64x128xf32>, vector<64x128xf32> -> vector<64x128xf32>
    %120 = arith.addf %91, %119 : vector<64x128xf32>
    %c0_106 = arith.constant 0 : index
    %c0_107 = arith.constant 0 : index
    %121 = vector.load %arg10[%c0_106, %c0_107] : memref<1x128xf32, #tpu.memory_space<vmem>>, vector<1x128xf32>
    %122 = vector.broadcast %121 : vector<1x128xf32> to vector<64x128xf32>
    %123 = arith.addf %120, %122 : vector<64x128xf32>
    %cst_108 = arith.constant 0.000000e+00 : f32
    %124 = vector.broadcast %cst_108 : f32 to vector<64x128xf32>
    %125 = arith.maximumf %123, %124 : vector<64x128xf32>
    %c0_109 = arith.constant 0 : index
    %c0_110 = arith.constant 0 : index
    %c0_111 = arith.constant 0 : index
    %126 = vector.load %arg11[%c0_109, %c0_110, %c0_111] : memref<1x64x128xf32, #tpu.memory_space<vmem>>, vector<1x64x128xf32>
    %127 = vector.shape_cast %126 : vector<1x64x128xf32> to vector<64x128xf32>
    %128 = vector.shape_cast %125 : vector<64x128xf32> to vector<1x64x128xf32>
    tpu.vector_store %arg11[%c0_109, %c0_110, %c0_111], %128 {strides = array<i32>} : memref<1x64x128xf32, #tpu.memory_space<vmem>>, vector<1x64x128xf32>,
    return
  }
  func.func @transform_0(%arg0: i32) -> (i32, i32, i32, i32) {
    %c0_i32 = arith.constant 0 : i32
    %c0_i32_0 = arith.constant 0 : i32
    %c0_i32_1 = arith.constant 0 : i32
    %c0_i32_2 = arith.constant 0 : i32
    return %arg0, %c0_i32, %c0_i32_0, %c0_i32_1 : i32, i32, i32, i32
  }
  func.func @transform_1(%arg0: i32) -> (i32, i32, i32) {
    %c0_i32 = arith.constant 0 : i32
    %c0_i32_0 = arith.constant 0 : i32
    %c0_i32_1 = arith.constant 0 : i32
    return %arg0, %c0_i32, %c0_i32_0 : i32, i32, i32
  }
  func.func @transform_2(%arg0: i32) -> (i32, i32) {
    %c0_i32 = arith.constant 0 : i32
    %c0_i32_0 = arith.constant 0 : i32
    %c0_i32_1 = arith.constant 0 : i32
    return %c0_i32, %c0_i32_0 : i32, i32
  }
  func.func @transform_3(%arg0: i32) -> (i32, i32) {
    %c0_i32 = arith.constant 0 : i32
    %c0_i32_0 = arith.constant 0 : i32
    %c0_i32_1 = arith.constant 0 : i32
    return %c0_i32, %c0_i32_0 : i32, i32
  }
  func.func @transform_4(%arg0: i32) -> (i32, i32, i32) {
    %c0_i32 = arith.constant 0 : i32
    %c0_i32_0 = arith.constant 0 : i32
    %c0_i32_1 = arith.constant 0 : i32
    %c0_i32_2 = arith.constant 0 : i32
    return %c0_i32, %c0_i32_0, %c0_i32_1 : i32, i32, i32
  }
  func.func @transform_5(%arg0: i32) -> (i32, i32, i32) {
    %c0_i32 = arith.constant 0 : i32
    %c0_i32_0 = arith.constant 0 : i32
    %c0_i32_1 = arith.constant 0 : i32
    %c0_i32_2 = arith.constant 0 : i32
    return %c0_i32, %c0_i32_0, %c0_i32_1 : i32, i32, i32
  }
  func.func @transform_6(%arg0: i32) -> (i32, i32, i32) {
    %c0_i32 = arith.constant 0 : i32
    %c0_i32_0 = arith.constant 0 : i32
    %c0_i32_1 = arith.constant 0 : i32
    %c0_i32_2 = arith.constant 0 : i32
    return %c0_i32, %c0_i32_0, %c0_i32_1 : i32, i32, i32
  }
  func.func @transform_7(%arg0: i32) -> (i32, i32, i32) {
    %c0_i32 = arith.constant 0 : i32
    %c0_i32_0 = arith.constant 0 : i32
    %c0_i32_1 = arith.constant 0 : i32
    %c0_i32_2 = arith.constant 0 : i32
    return %c0_i32, %c0_i32_0, %c0_i32_1 : i32, i32, i32
  }
  func.func @transform_8(%arg0: i32) -> (i32, i32) {
    %c0_i32 = arith.constant 0 : i32
    %c0_i32_0 = arith.constant 0 : i32
    %c0_i32_1 = arith.constant 0 : i32
    return %c0_i32, %c0_i32_0 : i32, i32
  }
  func.func @transform_9(%arg0: i32) -> (i32, i32) {
    %c0_i32 = arith.constant 0 : i32
    %c0_i32_0 = arith.constant 0 : i32
    %c0_i32_1 = arith.constant 0 : i32
    return %c0_i32, %c0_i32_0 : i32, i32
  }
  func.func @transform_10(%arg0: i32) -> (i32, i32, i32) {
    %c0_i32 = arith.constant 0 : i32
    %c0_i32_0 = arith.constant 0 : i32
    %c0_i32_1 = arith.constant 0 : i32
    return %arg0, %c0_i32, %c0_i32_0 : i32, i32, i32
  }
}

</mosaic_0001>

<llo_original>
// kernel: passthrough_forward.1
$region0: #{passthrough_forward.1}
  #allocation0 [shape = 'u32[]', space=smem, size = 0x4, offset = 0x4, fixed_abs, tag = 'smem constant byte address 0x4 - core index']
  #allocation1 [shape = 'u32[72,128]{1,0:T(1,128)}', space=vmem, size = 0x9000, scoped, tag = 'internal scratch']
  %s0 = inlined_call_operand.vmem [shape: bf16[2,16,8,128], index: 0, kind: input, shape index: {}]
  %s1 = inlined_call_operand.vmem [shape: bf16[2,64,128], index: 1, kind: input, shape index: {}]
  %s2 = inlined_call_operand.vmem [shape: bf16[128,64], index: 2, kind: input, shape index: {}]
  %s3 = inlined_call_operand.vmem [shape: bf16[128,64], index: 3, kind: input, shape index: {}]
  %s4 = inlined_call_operand.vmem [shape: bf16[9,64,128], index: 4, kind: input, shape index: {}]
  %s5 = inlined_call_operand.vmem [shape: bf16[9,128,128], index: 5, kind: input, shape index: {}]
  %s6 = inlined_call_operand.vmem [shape: bf16[2,64,64], index: 6, kind: input, shape index: {}]
  %s7 = inlined_call_operand.vmem [shape: f32[2,64,64], index: 7, kind: input, shape index: {}]
  %s8 = inlined_call_operand.vmem [shape: f32[1,64], index: 8, kind: input, shape index: {}]
  %s9 = inlined_call_operand.vmem [shape: f32[1,128], index: 9, kind: input, shape index: {}]
  %s10 = inlined_call_operand.hbm [shape: f32[2,64,128], index: 10, kind: output, shape index: {}]
  %s11 = sld [smem:[#allocation0]]
  $region73: #{passthrough_forward.1} parent=0
    _
  %s13 = ssub.s32 1, %s11
  %s14 = scalar_select 0, %s13, %s11
  $region1: #{passthrough_forward.1} parent=0
    #allocation2 [shape = 'u8[65536]{0}', space=vmem, size = 0x10000, scoped, tag = 'output window, operand 0']
    #allocation3 [shape = 's32[2]{0}', space=sflag, size = 0x8, scoped, tag = 'scoped memory for passthrough_forward.1']
    %15 = vsyncpa [#allocation3], 0
    %s16 = scalar_lea.sflag [#allocation3], 1
    %17 = vsyncpa %s16, 0
    loop: start=0, step=1, limit=4
    $region2: #{passthrough_forward.1} parent=1 // loop_pre_header
      _
    $region3: #{passthrough_forward.1} parent=1 // loop_header
      %s19 = sphi 0, %s23
      %p20 = scmp.ge.s32.totalorder %s19, 4
      %s29 = sphi 0, %s31
      %s32 = sphi 0, %s29
      %s33 = sphi 0, %s32
      %s49 = sphi 0, %s33
      %s55 = sphi 0, %s57
      %s58 = sphi 0, %s55
      %s59 = sphi 0, %s58
      %s75 = sphi 0, %s59
      %s79 = sphi 0, %s79
      %s81 = sphi 0, %s79
      %s82 = sphi 0, %s81
      %s96 = sphi 0, %s82
      %s100 = sphi 0, %s100
      %s102 = sphi 0, %s100
      %s103 = sphi 0, %s102
      %s117 = sphi 0, %s103
      %s121 = sphi 0, %s121
      %s123 = sphi 0, %s121
      %s124 = sphi 0, %s123
      %s138 = sphi 0, %s124
      %s142 = sphi 0, %s142
      %s144 = sphi 0, %s142
      %s145 = sphi 0, %s144
      %s159 = sphi 0, %s145
      %s163 = sphi 0, %s163
      %s165 = sphi 0, %s163
      %s166 = sphi 0, %s165
      %s180 = sphi 0, %s166
      %s184 = sphi 0, %s184
      %s186 = sphi 0, %s184
      %s187 = sphi 0, %s186
      %s201 = sphi 0, %s187
      %s205 = sphi 0, %s205
      %s207 = sphi 0, %s205
      %s208 = sphi 0, %s207
      %s222 = sphi 0, %s208
      %s226 = sphi 0, %s226
      %s228 = sphi 0, %s226
      %s229 = sphi 0, %s228
      %s243 = sphi 0, %s229
      %s249 = sphi 0, %s251
      %s252 = sphi 0, %s249
      %s253 = sphi 0, %s252
      %s269 = sphi 0, %s253
    $region4: #{passthrough_forward.1} parent=1 // loop_header_branch
      %22 = sbr.rel (%p20) target = $region8
    $region5: #{passthrough_forward.1} parent=1 // loop_body
      %s24 = ssub.s32 %s19, 1
      %s25 = ssub.s32 %s19, 2
      %s26 = sadd.s32 %s19, 1
      %s27 = ssub.s32 %s19, %s26
      %p28 = scmp.eq.s32.totalorder %s27, 0
      %s30 = sadd.s32 %s29, 1
      %s31 = scalar_select %p28, %s29, %s30
      %p34 = pneg %p28
      %p35 = scmp.eq.s32.totalorder %s19, 1
      %p36 = por %p34, %p35
      %p37 = scmp.ne.s32.totalorder %s29, %s32
      %p38 = scmp.eq.s32.totalorder %s19, 0
      %p39 = por %p37, %p38
      %p40 = scmp.ne.s32.totalorder %s29, %s32
      %p41 = scmp.eq.s32.totalorder %s24, 1
      %p42 = por %p40, %p41
      %p43 = scmp.ne.s32.totalorder %s32, %s33
      %p44 = scmp.eq.s32.totalorder %s24, 0
      %p45 = por %p43, %p44
      %p46 = scmp.ne.s32.totalorder %s32, %s33
      %p47 = scmp.eq.s32.totalorder %s25, 1
      %p48 = por %p46, %p47
      %p50 = scmp.ne.s32.totalorder %s33, %s49
      %p51 = scmp.eq.s32.totalorder %s25, 0
      %p52 = por %p50, %p51
      %s53 = ssub.s32 %s19, %s26
      %p54 = scmp.eq.s32.totalorder %s53, 0
      %s56 = sadd.s32 %s55, 1
      %s57 = scalar_select %p54, %s55, %s56
      %p60 = pneg %p54
      %p61 = scmp.eq.s32.totalorder %s19, 1
      %p62 = por %p60, %p61
      %p63 = scmp.ne.s32.totalorder %s55, %s58
      %p64 = scmp.eq.s32.totalorder %s19, 0
      %p65 = por %p63, %p64
      %p66 = scmp.ne.s32.totalorder %s55, %s58
      %p67 = scmp.eq.s32.totalorder %s24, 1
      %p68 = por %p66, %p67
      %p69 = scmp.ne.s32.totalorder %s58, %s59
      %p70 = scmp.eq.s32.totalorder %s24, 0
      %p71 = por %p69, %p70
      %p72 = scmp.ne.s32.totalorder %s58, %s59
      %p73 = scmp.eq.s32.totalorder %s25, 1
      %p74 = por %p72, %p73
      %p76 = scmp.ne.s32.totalorder %s59, %s75
      %p77 = scmp.eq.s32.totalorder %s25, 0
      %p78 = por %p76, %p77
      %s80 = sadd.s32 %s79, 1
      %p83 = scmp.eq.s32.totalorder %s19, 1
      %p84 = scmp.ne.s32.totalorder %s79, %s81
      %p85 = scmp.eq.s32.totalorder %s19, 0
      %p86 = por %p84, %p85
      %p87 = scmp.ne.s32.totalorder %s79, %s81
      %p88 = scmp.eq.s32.totalorder %s24, 1
      %p89 = por %p87, %p88
      %p90 = scmp.ne.s32.totalorder %s81, %s82
      %p91 = scmp.eq.s32.totalorder %s24, 0
      %p92 = por %p90, %p91
      %p93 = scmp.ne.s32.totalorder %s81, %s82
      %p94 = scmp.eq.s32.totalorder %s25, 1
      %p95 = por %p93, %p94
      %p97 = scmp.ne.s32.totalorder %s82, %s96
      %p98 = scmp.eq.s32.totalorder %s25, 0
      %p99 = por %p97, %p98
      %s101 = sadd.s32 %s100, 1
      %p104 = scmp.eq.s32.totalorder %s19, 1
      %p105 = scmp.ne.s32.totalorder %s100, %s102
      %p106 = scmp.eq.s32.totalorder %s19, 0
      %p107 = por %p105, %p106
      %p108 = scmp.ne.s32.totalorder %s100, %s102
      %p109 = scmp.eq.s32.totalorder %s24, 1
      %p110 = por %p108, %p109
      %p111 = scmp.ne.s32.totalorder %s102, %s103
      %p112 = scmp.eq.s32.totalorder %s24, 0
      %p113 = por %p111, %p112
      %p114 = scmp.ne.s32.totalorder %s102, %s103
      %p115 = scmp.eq.s32.totalorder %s25, 1
      %p116 = por %p114, %p115
      %p118 = scmp.ne.s32.totalorder %s103, %s117
      %p119 = scmp.eq.s32.totalorder %s25, 0
      %p120 = por %p118, %p119
      %s122 = sadd.s32 %s121, 1
      %p125 = scmp.eq.s32.totalorder %s19, 1
      %p126 = scmp.ne.s32.totalorder %s121, %s123
      %p127 = scmp.eq.s32.totalorder %s19, 0
      %p128 = por %p126, %p127
      %p129 = scmp.ne.s32.totalorder %s121, %s123
      %p130 = scmp.eq.s32.totalorder %s24, 1
      %p131 = por %p129, %p130
      %p132 = scmp.ne.s32.totalorder %s123, %s124
      %p133 = scmp.eq.s32.totalorder %s24, 0
      %p134 = por %p132, %p133
      %p135 = scmp.ne.s32.totalorder %s123, %s124
      %p136 = scmp.eq.s32.totalorder %s25, 1
      %p137 = por %p135, %p136
      %p139 = scmp.ne.s32.totalorder %s124, %s138
      %p140 = scmp.eq.s32.totalorder %s25, 0
      %p141 = por %p139, %p140
      %s143 = sadd.s32 %s142, 1
      %p146 = scmp.eq.s32.totalorder %s19, 1
      %p147 = scmp.ne.s32.totalorder %s142, %s144
      %p148 = scmp.eq.s32.totalorder %s19, 0
      %p149 = por %p147, %p148
      %p150 = scmp.ne.s32.totalorder %s142, %s144
      %p151 = scmp.eq.s32.totalorder %s24, 1
      %p152 = por %p150, %p151
      %p153 = scmp.ne.s32.totalorder %s144, %s145
      %p154 = scmp.eq.s32.totalorder %s24, 0
      %p155 = por %p153, %p154
      %p156 = scmp.ne.s32.totalorder %s144, %s145
      %p157 = scmp.eq.s32.totalorder %s25, 1
      %p158 = por %p156, %p157
      %p160 = scmp.ne.s32.totalorder %s145, %s159
      %p161 = scmp.eq.s32.totalorder %s25, 0
      %p162 = por %p160, %p161
      %s164 = sadd.s32 %s163, 1
      %p167 = scmp.eq.s32.totalorder %s19, 1
      %p168 = scmp.ne.s32.totalorder %s163, %s165
      %p169 = scmp.eq.s32.totalorder %s19, 0
      %p170 = por %p168, %p169
      %p171 = scmp.ne.s32.totalorder %s163, %s165
      %p172 = scmp.eq.s32.totalorder %s24, 1
      %p173 = por %p171, %p172
      %p174 = scmp.ne.s32.totalorder %s165, %s166
      %p175 = scmp.eq.s32.totalorder %s24, 0
      %p176 = por %p174, %p175
      %p177 = scmp.ne.s32.totalorder %s165, %s166
      %p178 = scmp.eq.s32.totalorder %s25, 1
      %p179 = por %p177, %p178
      %p181 = scmp.ne.s32.totalorder %s166, %s180
      %p182 = scmp.eq.s32.totalorder %s25, 0
      %p183 = por %p181, %p182
      %s185 = sadd.s32 %s184, 1
      %p188 = scmp.eq.s32.totalorder %s19, 1
      %p189 = scmp.ne.s32.totalorder %s184, %s186
      %p190 = scmp.eq.s32.totalorder %s19, 0
      %p191 = por %p189, %p190
      %p192 = scmp.ne.s32.totalorder %s184, %s186
      %p193 = scmp.eq.s32.totalorder %s24, 1
      %p194 = por %p192, %p193
      %p195 = scmp.ne.s32.totalorder %s186, %s187
      %p196 = scmp.eq.s32.totalorder %s24, 0
      %p197 = por %p195, %p196
      %p198 = scmp.ne.s32.totalorder %s186, %s187
      %p199 = scmp.eq.s32.totalorder %s25, 1
      %p200 = por %p198, %p199
      %p202 = scmp.ne.s32.totalorder %s187, %s201
      %p203 = scmp.eq.s32.totalorder %s25, 0
      %p204 = por %p202, %p203
      %s206 = sadd.s32 %s205, 1
      %p209 = scmp.eq.s32.totalorder %s19, 1
      %p210 = scmp.ne.s32.totalorder %s205, %s207
      %p211 = scmp.eq.s32.totalorder %s19, 0
      %p212 = por %p210, %p211
      %p213 = scmp.ne.s32.totalorder %s205, %s207
      %p214 = scmp.eq.s32.totalorder %s24, 1
      %p215 = por %p213, %p214
      %p216 = scmp.ne.s32.totalorder %s207, %s208
      %p217 = scmp.eq.s32.totalorder %s24, 0
      %p218 = por %p216, %p217
      %p219 = scmp.ne.s32.totalorder %s207, %s208
      %p220 = scmp.eq.s32.totalorder %s25, 1
      %p221 = por %p219, %p220
      %p223 = scmp.ne.s32.totalorder %s208, %s222
      %p224 = scmp.eq.s32.totalorder %s25, 0
      %p225 = por %p223, %p224
      %s227 = sadd.s32 %s226, 1
      %p230 = scmp.eq.s32.totalorder %s19, 1
      %p231 = scmp.ne.s32.totalorder %s226, %s228
      %p232 = scmp.eq.s32.totalorder %s19, 0
      %p233 = por %p231, %p232
      %p234 = scmp.ne.s32.totalorder %s226, %s228
      %p235 = scmp.eq.s32.totalorder %s24, 1
      %p236 = por %p234, %p235
      %p237 = scmp.ne.s32.totalorder %s228, %s229
      %p238 = scmp.eq.s32.totalorder %s24, 0
      %p239 = por %p237, %p238
      %p240 = scmp.ne.s32.totalorder %s228, %s229
      %p241 = scmp.eq.s32.totalorder %s25, 1
      %p242 = por %p240, %p241
      %p244 = scmp.ne.s32.totalorder %s229, %s243
      %p245 = scmp.eq.s32.totalorder %s25, 0
      %p246 = por %p244, %p245
      %s247 = ssub.s32 %s19, %s26
      %p248 = scmp.eq.s32.totalorder %s247, 0
      %s250 = sadd.s32 %s249, 1
      %s251 = scalar_select %p248, %s249, %s250
      %p254 = pneg %p248
      %p255 = scmp.eq.s32.totalorder %s19, 1
      %p256 = por %p254, %p255
      %p257 = scmp.ne.s32.totalorder %s249, %s252
      %p258 = scmp.eq.s32.totalorder %s19, 0
      %p259 = por %p257, %p258
      %p260 = scmp.ne.s32.totalorder %s249, %s252
      %p261 = scmp.eq.s32.totalorder %s24, 1
      %p262 = por %p260, %p261
      %p263 = scmp.ne.s32.totalorder %s252, %s253
      %p264 = scmp.eq.s32.totalorder %s24, 0
      %p265 = por %p263, %p264
      %p266 = scmp.ne.s32.totalorder %s252, %s253
      %p267 = scmp.eq.s32.totalorder %s25, 1
      %p268 = por %p266, %p267
      %p270 = scmp.ne.s32.totalorder %s253, %s269
      %p271 = scmp.eq.s32.totalorder %s25, 0
      %p272 = por %p270, %p271
      %p273 = scmp.le.s32.totalorder 1, %s19
      %p274 = scmp.lt.s32.totalorder %s19, 3
      %p275 = pnand %p273, %p274
      %p276 = pneg %p275
      // Predicated region
      $region9: #{passthrough_forward.1} parent=5 // pred_check
        _
      $region10: #{passthrough_forward.1} parent=5 // pred_check_branch
        %278 = sbr.rel (%p275) target = $region12
      $region11: #{passthrough_forward.1} parent=5 // pred_region
        %s279 = ssub.s32 %s19, 1
        // Predicated region
        $region13: #{passthrough_forward.1} parent=11 // pred_check
          %p280 = pneg %p92
        $region14: #{passthrough_forward.1} parent=11 // pred_check_branch
          %282 = sbr.rel (%p280) target = $region16
        $region15: #{passthrough_forward.1} parent=11 // pred_region
          _
        $region16: #{passthrough_forward.1} parent=11 // pred_fallthru
          _
        // Predicated region
        $region17: #{passthrough_forward.1} parent=11 // pred_check
          %p283 = pneg %p113
        $region18: #{passthrough_forward.1} parent=11 // pred_check_branch
          %285 = sbr.rel (%p283) target = $region20
        $region19: #{passthrough_forward.1} parent=11 // pred_region
          _
        $region20: #{passthrough_forward.1} parent=11 // pred_fallthru
          _
        // Predicated region
        $region21: #{passthrough_forward.1} parent=11 // pred_check
          %p286 = pneg %p134
        $region22: #{passthrough_forward.1} parent=11 // pred_check_branch
          %288 = sbr.rel (%p286) target = $region24
        $region23: #{passthrough_forward.1} parent=11 // pred_region
          _
        $region24: #{passthrough_forward.1} parent=11 // pred_fallthru
          _
        // Predicated region
        $region25: #{passthrough_forward.1} parent=11 // pred_check
          %p289 = pneg %p155
        $region26: #{passthrough_forward.1} parent=11 // pred_check_branch
          %291 = sbr.rel (%p289) target = $region28
        $region27: #{passthrough_forward.1} parent=11 // pred_region
          _
        $region28: #{passthrough_forward.1} parent=11 // pred_fallthru
          _
        // Predicated region
        $region29: #{passthrough_forward.1} parent=11 // pred_check
          %p292 = pneg %p176
        $region30: #{passthrough_forward.1} parent=11 // pred_check_branch
          %294 = sbr.rel (%p292) target = $region32
        $region31: #{passthrough_forward.1} parent=11 // pred_region
          _
        $region32: #{passthrough_forward.1} parent=11 // pred_fallthru
          _
        // Predicated region
        $region33: #{passthrough_forward.1} parent=11 // pred_check
          %p295 = pneg %p197
        $region34: #{passthrough_forward.1} parent=11 // pred_check_branch
          %297 = sbr.rel (%p295) target = $region36
        $region35: #{passthrough_forward.1} parent=11 // pred_region
          _
        $region36: #{passthrough_forward.1} parent=11 // pred_fallthru
          _
        // Predicated region
        $region37: #{passthrough_forward.1} parent=11 // pred_check
          %p298 = pneg %p218
        $region38: #{passthrough_forward.1} parent=11 // pred_check_branch
          %300 = sbr.rel (%p298) target = $region40
        $region39: #{passthrough_forward.1} parent=11 // pred_region
          _
        $region40: #{passthrough_forward.1} parent=11 // pred_fallthru
          _
        // Predicated region
        $region41: #{passthrough_forward.1} parent=11 // pred_check
          %p301 = pneg %p239
        $region42: #{passthrough_forward.1} parent=11 // pred_check_branch
          %303 = sbr.rel (%p301) target = $region44
        $region43: #{passthrough_forward.1} parent=11 // pred_region
          _
        $region44: #{passthrough_forward.1} parent=11 // pred_fallthru
          _
      $region12: #{passthrough_forward.1} parent=5 // pred_fallthru
        _
      %p304 = scmp.lt.s32.totalorder %s19, 2
      // Predicated region
      $region45: #{passthrough_forward.1} parent=5 // pred_check
        %p305 = pneg %p304
      $region46: #{passthrough_forward.1} parent=5 // pred_check_branch
        %307 = sbr.rel (%p305) target = $region48
      $region47: #{passthrough_forward.1} parent=5 // pred_region
        // Predicated region
        $region49: #{passthrough_forward.1} parent=47 // pred_check
          %p308 = pneg %p39
        $region50: #{passthrough_forward.1} parent=47 // pred_check_branch
          %310 = sbr.rel (%p308) target = $region52
        $region51: #{passthrough_forward.1} parent=47 // pred_region
          %p311 = scmp.lt.s32.totalorder %s19, 1
          %s312 = scalar_select %p311, %s19, 1
          %s313 = smul.addr %s312, 16
          %s314 = smul.addr %s313, 4
          %s315 = scalar_lea.vmem %s0, %s314
        $region52: #{passthrough_forward.1} parent=47 // pred_fallthru
          _
        // Predicated region
        $region53: #{passthrough_forward.1} parent=47 // pred_check
          %p316 = pneg %p65
        $region54: #{passthrough_forward.1} parent=47 // pred_check_branch
          %318 = sbr.rel (%p316) target = $region56
        $region55: #{passthrough_forward.1} parent=47 // pred_region
          %p319 = scmp.lt.s32.totalorder %s19, 1
          %s320 = scalar_select %p319, %s19, 1
          %s321 = smul.addr %s320, 8
          %s322 = smul.addr %s321, 4
          %s323 = scalar_lea.vmem %s1, %s322
        $region56: #{passthrough_forward.1} parent=47 // pred_fallthru
          _
      $region48: #{passthrough_forward.1} parent=5 // pred_fallthru
        _
      %p324 = scmp.le.s32.totalorder 1, %s19
      %p325 = scmp.lt.s32.totalorder %s19, 3
      %p326 = pnand %p324, %p325
      %p327 = pneg %p326
      // Predicated region
      $region57: #{passthrough_forward.1} parent=5 // pred_check
        _
      $region58: #{passthrough_forward.1} parent=5 // pred_check_branch
        %329 = sbr.rel (%p326) target = $region60
      $region59: #{passthrough_forward.1} parent=5 // pred_region
        %s330 = ssub.s32 %s19, 1
        %p331 = scmp.lt.s32.totalorder %s24, 1
        %s332 = scalar_select %p331, %s24, 1
        %s333 = smul.addr %s332, 16
        %s334 = smul.addr %s333, 4
        %s335 = scalar_lea.vmem %s0, %s334
        %p336 = pneg %p45
        %p337 = pneg %p42
        %p338 = scmp.lt.s32.totalorder %s24, 1
        %s339 = scalar_select %p338, %s24, 1
        %s340 = smul.addr %s339, 8
        %s341 = smul.addr %s340, 4
        %s342 = scalar_lea.vmem %s1, %s341
        %p343 = pneg %p71
        %p344 = pneg %p68
        %p345 = pneg %p92
        %p346 = pneg %p89
        %p347 = pneg %p113
        %p348 = pneg %p110
        %p349 = pneg %p134
        %p350 = pneg %p131
        %p351 = pneg %p155
        %p352 = pneg %p152
        %p353 = pneg %p176
        %p354 = pneg %p173
        %p355 = pneg %p197
        %p356 = pneg %p194
        %p357 = pneg %p218
        %p358 = pneg %p215
        %p359 = pneg %p239
        %p360 = pneg %p236
        %p361 = pneg %p265
        %p362 = pneg %p262
        %s363 = sand.u32 %s252, 1
        %s364 = scalar_lea.sflag [#allocation3], %s363
        %s365 = sand.u32 %s252, 1
        %s366 = smul.addr %s365, 64
        %s367 = scalar_lea.vmem [#allocation2], %s366
        %p368 = scmp.lt.s32.totalorder %s24, 1
        %s369 = scalar_select %p368, %s24, 1
        %s370 = smul.addr %s369, 16
        %s371 = smul.addr %s370, 4
        %s372 = scalar_lea.vmem %s0, %s371
        %p373 = scmp.lt.s32.totalorder %s24, 1
        %s374 = scalar_select %p373, %s24, 1
        %s375 = smul.addr %s374, 8
        %s376 = smul.addr %s375, 4
        %s377 = scalar_lea.vmem %s1, %s376
        %v379 = vld [vmem:[%s372] sm:$0xf]
        %v380 = vld [vmem:[%s372 + $0x4] sm:$0xf]
        %v381 = vld [vmem:[%s372 + $0x8] sm:$0xf]
        %v382 = vld [vmem:[%s372 + $0xc] sm:$0xf]
        %v383 = vld [vmem:[%s372 + $0x10] sm:$0xf]
        %v384 = vld [vmem:[%s372 + $0x14] sm:$0xf]
        %v385 = vld [vmem:[%s372 + $0x18] sm:$0xf]
        %v386 = vld [vmem:[%s372 + $0x1c] sm:$0xf]
        %v387 = vld [vmem:[%s372 + $0x20] sm:$0xf]
        %v388 = vld [vmem:[%s372 + $0x24] sm:$0xf]
        %v389 = vld [vmem:[%s372 + $0x28] sm:$0xf]
        %v390 = vld [vmem:[%s372 + $0x2c] sm:$0xf]
        %v391 = vld [vmem:[%s372 + $0x30] sm:$0xf]
        %v392 = vld [vmem:[%s372 + $0x34] sm:$0xf]
        %v393 = vld [vmem:[%s372 + $0x38] sm:$0xf]
        %v394 = vld [vmem:[%s372 + $0x3c] sm:$0xf]
        %v395 = vld [vmem:[%s2] sm:$0xf]
        %v396 = vld [vmem:[%s2 + $0x4] sm:$0xf]
        %v397 = vld [vmem:[%s2 + $0x8] sm:$0xf]
        %v398 = vld [vmem:[%s2 + $0xc] sm:$0xf]
        %v399 = vld [vmem:[%s2 + $0x10] sm:$0xf]
        %v400 = vld [vmem:[%s2 + $0x14] sm:$0xf]
        %v401 = vld [vmem:[%s2 + $0x18] sm:$0xf]
        %v402 = vld [vmem:[%s2 + $0x1c] sm:$0xf]
        %v403 = vld [vmem:[%s2 + $0x20] sm:$0xf]
        %v404 = vld [vmem:[%s2 + $0x24] sm:$0xf]
        %v405 = vld [vmem:[%s2 + $0x28] sm:$0xf]
        %v406 = vld [vmem:[%s2 + $0x2c] sm:$0xf]
        %v407 = vld [vmem:[%s2 + $0x30] sm:$0xf]
        %v408 = vld [vmem:[%s2 + $0x34] sm:$0xf]
        %v409 = vld [vmem:[%s2 + $0x38] sm:$0xf]
        %v410 = vld [vmem:[%s2 + $0x3c] sm:$0xf]
        %v411 = vld [vmem:[%s3] sm:$0xf]
        %v412 = vld [vmem:[%s3 + $0x4] sm:$0xf]
        %v413 = vld [vmem:[%s3 + $0x8] sm:$0xf]
        %v414 = vld [vmem:[%s3 + $0xc] sm:$0xf]
        %v415 = vld [vmem:[%s3 + $0x10] sm:$0xf]
        %v416 = vld [vmem:[%s3 + $0x14] sm:$0xf]
        %v417 = vld [vmem:[%s3 + $0x18] sm:$0xf]
        %v418 = vld [vmem:[%s3 + $0x1c] sm:$0xf]
        %v419 = vld [vmem:[%s3 + $0x20] sm:$0xf]
        %v420 = vld [vmem:[%s3 + $0x24] sm:$0xf]
        %v421 = vld [vmem:[%s3 + $0x28] sm:$0xf]
        %v422 = vld [vmem:[%s3 + $0x2c] sm:$0xf]
        %v423 = vld [vmem:[%s3 + $0x30] sm:$0xf]
        %v424 = vld [vmem:[%s3 + $0x34] sm:$0xf]
        %v425 = vld [vmem:[%s3 + $0x38] sm:$0xf]
        %v426 = vld [vmem:[%s3 + $0x3c] sm:$0xf]
        %v435 = vunpack.c.l.b16 %v380
        %v436 = vunpack.c.l.b16 %v382
        %v437 = vunpack.c.l.b16 %v384
        %v438 = vunpack.c.l.b16 %v386
        %v439 = vunpack.c.l.b16 %v388
        %v440 = vunpack.c.l.b16 %v390
        %v441 = vunpack.c.l.b16 %v392
        %v442 = vunpack.c.l.b16 %v394
        %v443 = vpack.c.b16 %v436, %v435
        %v444 = vpack.c.b16 %v438, %v437
        %v445 = vpack.c.b16 %v440, %v439
        %v446 = vpack.c.b16 %v442, %v441
        %v467 = vunpack.c.l.b16 %v411
        %v468 = vunpack.c.l.b16 %v412
        %v469 = vunpack.c.l.b16 %v413
        %v470 = vunpack.c.l.b16 %v414
        %v471 = vunpack.c.l.b16 %v415
        %v472 = vunpack.c.l.b16 %v416
        %v473 = vunpack.c.l.b16 %v417
        %v474 = vunpack.c.l.b16 %v418
        %v475 = vunpack.c.l.b16 %v419
        %v476 = vunpack.c.l.b16 %v420
        %v477 = vunpack.c.l.b16 %v421
        %v478 = vunpack.c.l.b16 %v422
        %v479 = vunpack.c.l.b16 %v423
        %v480 = vunpack.c.l.b16 %v424
        %v481 = vunpack.c.l.b16 %v425
        %v482 = vunpack.c.l.b16 %v426
        %v483 = vpack.c.b16 %v468, %v467
        %v484 = vpack.c.b16 %v470, %v469
        %v485 = vpack.c.b16 %v472, %v471
        %v486 = vpack.c.b16 %v474, %v473
        %v487 = vpack.c.b16 %v476, %v475
        %v488 = vpack.c.b16 %v478, %v477
        %v489 = vpack.c.b16 %v480, %v479
        %v490 = vpack.c.b16 %v482, %v481
        %499 = vmatpush.bf16.msra.mxu0 %v490
        %500 = vmatpush.bf16.msra.mxu0 %v489
        %501 = vmatpush.bf16.msra.mxu0 %v488
        %502 = vmatpush.bf16.msra.mxu0 %v487
        %503 = vmatpush.bf16.msra.mxu0 %v486
        %504 = vmatpush.bf16.msra.mxu0 %v485
        %505 = vmatpush.bf16.msra.mxu0 %v484
        %506 = vmatpush.bf16.msra.mxu0 %v483
        %507 = vmatmul.bf16.gmra.mxu0 %v443
        %v508 = vpop.f32.mrf.mxu0
        %v509 = vadd.f32 0.0, %v508
        %v510 = vpop.f32.mrf.mxu0
        %v511 = vadd.f32 0.0, %v510
        %512 = vmatmul.bf16.gmra.mxu0 %v444
        %v513 = vpop.f32.mrf.mxu0
        %v514 = vadd.f32 0.0, %v513
        %v515 = vpop.f32.mrf.mxu0
        %v516 = vadd.f32 0.0, %v515
        %517 = vmatmul.bf16.gmra.mxu0 %v445
        %v518 = vpop.f32.mrf.mxu0
        %v519 = vadd.f32 0.0, %v518
        %v520 = vpop.f32.mrf.mxu0
        %v521 = vadd.f32 0.0, %v520
        %522 = vmatmul.bf16.gmra.mxu0 %v446
        %v523 = vpop.f32.mrf.mxu0
        %v524 = vadd.f32 0.0, %v523
        %v525 = vpop.f32.mrf.mxu0
        %v526 = vadd.f32 0.0, %v525
        %527 = vdwg.mxu0
        %v536 = vunpack.c.l.b16 %v379
        %v537 = vunpack.c.l.b16 %v381
        %v538 = vunpack.c.l.b16 %v383
        %v539 = vunpack.c.l.b16 %v385
        %v540 = vunpack.c.l.b16 %v387
        %v541 = vunpack.c.l.b16 %v389
        %v542 = vunpack.c.l.b16 %v391
        %v543 = vunpack.c.l.b16 %v393
        %v544 = vpack.c.b16 %v537, %v536
        %v545 = vpack.c.b16 %v539, %v538
        %v546 = vpack.c.b16 %v541, %v540
        %v547 = vpack.c.b16 %v543, %v542
        %v568 = vunpack.c.l.b16 %v395
        %v569 = vunpack.c.l.b16 %v396
        %v570 = vunpack.c.l.b16 %v397
        %v571 = vunpack.c.l.b16 %v398
        %v572 = vunpack.c.l.b16 %v399
        %v573 = vunpack.c.l.b16 %v400
        %v574 = vunpack.c.l.b16 %v401
        %v575 = vunpack.c.l.b16 %v402
        %v576 = vunpack.c.l.b16 %v403
        %v577 = vunpack.c.l.b16 %v404
        %v578 = vunpack.c.l.b16 %v405
        %v579 = vunpack.c.l.b16 %v406
        %v580 = vunpack.c.l.b16 %v407
        %v581 = vunpack.c.l.b16 %v408
        %v582 = vunpack.c.l.b16 %v409
        %v583 = vunpack.c.l.b16 %v410
        %v584 = vpack.c.b16 %v569, %v568
        %v585 = vpack.c.b16 %v571, %v570
        %v586 = vpack.c.b16 %v573, %v572
        %v587 = vpack.c.b16 %v575, %v574
        %v588 = vpack.c.b16 %v577, %v576
        %v589 = vpack.c.b16 %v579, %v578
        %v590 = vpack.c.b16 %v581, %v580
        %v591 = vpack.c.b16 %v583, %v582
        %600 = vmatpush.bf16.msra.mxu0 %v591
        %601 = vmatpush.bf16.msra.mxu0 %v590
        %602 = vmatpush.bf16.msra.mxu0 %v589
        %603 = vmatpush.bf16.msra.mxu0 %v588
        %604 = vmatpush.bf16.msra.mxu0 %v587
        %605 = vmatpush.bf16.msra.mxu0 %v586
        %606 = vmatpush.bf16.msra.mxu0 %v585
        %607 = vmatpush.bf16.msra.mxu0 %v584
        %608 = vmatmul.bf16.gmra.mxu0 %v544
        %v609 = vpop.f32.mrf.mxu0
        %v610 = vadd.f32 %v509, %v609
        %v611 = vpop.f32.mrf.mxu0
        %v612 = vadd.f32 %v511, %v611
        %613 = vmatmul.bf16.gmra.mxu0 %v545
        %v614 = vpop.f32.mrf.mxu0
        %v615 = vadd.f32 %v514, %v614
        %v616 = vpop.f32.mrf.mxu0
        %v617 = vadd.f32 %v516, %v616
        %618 = vmatmul.bf16.gmra.mxu0 %v546
        %v619 = vpop.f32.mrf.mxu0
        %v620 = vadd.f32 %v519, %v619
        %v621 = vpop.f32.mrf.mxu0
        %v622 = vadd.f32 %v521, %v621
        %623 = vmatmul.bf16.gmra.mxu0 %v547
        %v624 = vpop.f32.mrf.mxu0
        %v625 = vadd.f32 %v524, %v624
        %v626 = vpop.f32.mrf.mxu0
        %v627 = vadd.f32 %v526, %v626
        %628 = vdwg.mxu0
        %v629 = vld [vmem:[%s8] sm:$0x1]
        %v631 = vperm.slane %v629, 0
        %v633 = vadd.f32 %v610, %v631
        %v634 = vadd.f32 %v612, %v631
        %v635 = vadd.f32 %v615, %v631
        %v636 = vadd.f32 %v617, %v631
        %v637 = vadd.f32 %v620, %v631
        %v638 = vadd.f32 %v622, %v631
        %v639 = vadd.f32 %v625, %v631
        %v640 = vadd.f32 %v627, %v631
        %v641 = vmax.f32 %v633, 0.0
        %v642 = vmax.f32 %v634, 0.0
        %v643 = vmax.f32 %v635, 0.0
        %v644 = vmax.f32 %v636, 0.0
        %v645 = vmax.f32 %v637, 0.0
        %v646 = vmax.f32 %v638, 0.0
        %v647 = vmax.f32 %v639, 0.0
        %v648 = vmax.f32 %v640, 0.0
        %v649 = vpack.c.bf16 %v642, %v641
        %v650 = vpack.c.bf16 %v644, %v643
        %v651 = vpack.c.bf16 %v646, %v645
        %v652 = vpack.c.bf16 %v648, %v647
        %v653 = vld [vmem:[%s377] sm:$0xf]
        %v654 = vld [vmem:[%s377 + $0x4] sm:$0xf]
        %v655 = vld [vmem:[%s377 + $0x8] sm:$0xf]
        %v656 = vld [vmem:[%s377 + $0xc] sm:$0xf]
        %v657 = vld [vmem:[%s377 + $0x10] sm:$0xf]
        %v658 = vld [vmem:[%s377 + $0x14] sm:$0xf]
        %v659 = vld [vmem:[%s377 + $0x18] sm:$0xf]
        %v660 = vld [vmem:[%s377 + $0x1c] sm:$0xf]
        %v661 = vld [vmem:[%s6] sm:$0xf]
        %v662 = vld [vmem:[%s6 + $0x4] sm:$0xf]
        %v663 = vld [vmem:[%s6 + $0x8] sm:$0xf]
        %v664 = vld [vmem:[%s6 + $0xc] sm:$0xf]
        %v665 = vld [vmem:[%s6 + $0x10] sm:$0xf]
        %v666 = vld [vmem:[%s6 + $0x14] sm:$0xf]
        %v667 = vld [vmem:[%s6 + $0x18] sm:$0xf]
        %v668 = vld [vmem:[%s6 + $0x1c] sm:$0xf]
        %v677 = vunpack.c.l.b16 %v661
        %v678 = vunpack.c.l.b16 %v662
        %v679 = vunpack.c.l.b16 %v663
        %v680 = vunpack.c.l.b16 %v664
        %v681 = vunpack.c.l.b16 %v665
        %v682 = vunpack.c.l.b16 %v666
        %v683 = vunpack.c.l.b16 %v667
        %v684 = vunpack.c.l.b16 %v668
        %v685 = vpack.c.b16 %v678, %v677
        %v686 = vpack.c.b16 %v680, %v679
        %v687 = vpack.c.b16 %v682, %v681
        %v688 = vpack.c.b16 %v684, %v683
        %vm689 = vcmask 523264
        %v691 = vsel %vm689, %v685, 0
        %v694 = vsel %vm689, %v686, 0
        %v697 = vsel %vm689, %v687, 0
        %v700 = vsel %vm689, %v688, 0
        %702 = vmatpush.bf16.msra.mxu0 0
        %703 = vmatpush.bf16.msra.mxu0 0
        %704 = vmatpush.bf16.msra.mxu0 0
        %705 = vmatpush.bf16.msra.mxu0 0
        %706 = vmatpush.bf16.msra.mxu0 %v652
        %707 = vmatpush.bf16.msra.mxu0 %v651
        %708 = vmatpush.bf16.msra.mxu0 %v650
        %709 = vmatpush.bf16.msra.mxu0 %v649
        %710 = vmatmul.bf16.gmra.mxu0 %v691
        %v711 = vpop.f32.mrf.mxu0
        %v712 = vadd.f32 0.0, %v711
        %v713 = vpop.f32.mrf.mxu0
        %v714 = vadd.f32 0.0, %v713
        %715 = vmatmul.bf16.gmra.mxu0 %v694
        %v716 = vpop.f32.mrf.mxu0
        %v717 = vadd.f32 0.0, %v716
        %v718 = vpop.f32.mrf.mxu0
        %v719 = vadd.f32 0.0, %v718
        %720 = vmatmul.bf16.gmra.mxu0 %v697
        %v721 = vpop.f32.mrf.mxu0
        %v722 = vadd.f32 0.0, %v721
        %v723 = vpop.f32.mrf.mxu0
        %v724 = vadd.f32 0.0, %v723
        %725 = vmatmul.bf16.gmra.mxu0 %v700
        %v726 = vpop.f32.mrf.mxu0
        %v727 = vadd.f32 0.0, %v726
        %v728 = vpop.f32.mrf.mxu0
        %v729 = vadd.f32 0.0, %v728
        %730 = vdwg.mxu0
        %v731 = vpack.c.bf16 %v714, %v712
        %v732 = vpack.c.bf16 %v719, %v717
        %v733 = vpack.c.bf16 %v724, %v722
        %v734 = vpack.c.bf16 %v729, %v727
        %s735 = scalar_lea.vmem %s6, 32
        %v736 = vld [vmem:[%s735] sm:$0xf]
        %v737 = vld [vmem:[%s735 + $0x4] sm:$0xf]
        %v738 = vld [vmem:[%s735 + $0x8] sm:$0xf]
        %v739 = vld [vmem:[%s735 + $0xc] sm:$0xf]
        %v740 = vld [vmem:[%s735 + $0x10] sm:$0xf]
        %v741 = vld [vmem:[%s735 + $0x14] sm:$0xf]
        %v742 = vld [vmem:[%s735 + $0x18] sm:$0xf]
        %v743 = vld [vmem:[%s735 + $0x1c] sm:$0xf]
        %v752 = vunpack.c.l.b16 %v736
        %v753 = vunpack.c.l.b16 %v737
        %v754 = vunpack.c.l.b16 %v738
        %v755 = vunpack.c.l.b16 %v739
        %v756 = vunpack.c.l.b16 %v740
        %v757 = vunpack.c.l.b16 %v741
        %v758 = vunpack.c.l.b16 %v742
        %v759 = vunpack.c.l.b16 %v743
        %v760 = vpack.c.b16 %v753, %v752
        %v761 = vpack.c.b16 %v755, %v754
        %v762 = vpack.c.b16 %v757, %v756
        %v763 = vpack.c.b16 %v759, %v758
        %v765 = vsel %vm689, %v760, 0
        %v768 = vsel %vm689, %v761, 0
        %v771 = vsel %vm689, %v762, 0
        %v774 = vsel %vm689, %v763, 0
        %776 = vmatpush.bf16.msra.mxu0 0
        %777 = vmatpush.bf16.msra.mxu0 0
        %778 = vmatpush.bf16.msra.mxu0 0
        %779 = vmatpush.bf16.msra.mxu0 0
        %780 = vmatpush.bf16.msra.mxu0 %v652
        %781 = vmatpush.bf16.msra.mxu0 %v651
        %782 = vmatpush.bf16.msra.mxu0 %v650
        %783 = vmatpush.bf16.msra.mxu0 %v649
        %784 = vmatmul.bf16.gmra.mxu0 %v765
        %v785 = vpop.f32.mrf.mxu0
        %v786 = vadd.f32 0.0, %v785
        %v787 = vpop.f32.mrf.mxu0
        %v788 = vadd.f32 0.0, %v787
        %789 = vmatmul.bf16.gmra.mxu0 %v768
        %v790 = vpop.f32.mrf.mxu0
        %v791 = vadd.f32 0.0, %v790
        %v792 = vpop.f32.mrf.mxu0
        %v793 = vadd.f32 0.0, %v792
        %794 = vmatmul.bf16.gmra.mxu0 %v771
        %v795 = vpop.f32.mrf.mxu0
        %v796 = vadd.f32 0.0, %v795
        %v797 = vpop.f32.mrf.mxu0
        %v798 = vadd.f32 0.0, %v797
        %799 = vmatmul.bf16.gmra.mxu0 %v774
        %v800 = vpop.f32.mrf.mxu0
        %v801 = vadd.f32 0.0, %v800
        %v802 = vpop.f32.mrf.mxu0
        %v803 = vadd.f32 0.0, %v802
        %804 = vdwg.mxu0
        %v805 = vpack.c.bf16 %v788, %v786
        %v806 = vpack.c.bf16 %v793, %v791
        %v807 = vpack.c.bf16 %v798, %v796
        %v808 = vpack.c.bf16 %v803, %v801
        %v817 = vunpack.c.l.b16 %v653
        %v818 = vunpack.c.l.b16 %v654
        %v819 = vunpack.c.l.b16 %v655
        %v820 = vunpack.c.l.b16 %v656
        %v821 = vunpack.c.l.b16 %v657
        %v822 = vunpack.c.l.b16 %v658
        %v823 = vunpack.c.l.b16 %v659
        %v824 = vunpack.c.l.b16 %v660
        %v825 = vpack.c.b16 %v818, %v817
        %v826 = vpack.c.b16 %v820, %v819
        %v827 = vpack.c.b16 %v822, %v821
        %v828 = vpack.c.b16 %v824, %v823
        %833 = vmatpush.bf16.msra.mxu0 0
        %834 = vmatpush.bf16.msra.mxu0 0
        %835 = vmatpush.bf16.msra.mxu0 0
        %836 = vmatpush.bf16.msra.mxu0 0
        %837 = vmatpush.bf16.msra.mxu0 %v828
        %838 = vmatpush.bf16.msra.mxu0 %v827
        %839 = vmatpush.bf16.msra.mxu0 %v826
        %840 = vmatpush.bf16.msra.mxu0 %v825
        %841 = vmatmul.bf16.gmra.mxu0 %v691
        %v842 = vpop.f32.mrf.mxu0
        %v843 = vadd.f32 0.0, %v842
        %v844 = vpop.f32.mrf.mxu0
        %v845 = vadd.f32 0.0, %v844
        %846 = vmatmul.bf16.gmra.mxu0 %v694
        %v847 = vpop.f32.mrf.mxu0
        %v848 = vadd.f32 0.0, %v847
        %v849 = vpop.f32.mrf.mxu0
        %v850 = vadd.f32 0.0, %v849
        %851 = vmatmul.bf16.gmra.mxu0 %v697
        %v852 = vpop.f32.mrf.mxu0
        %v853 = vadd.f32 0.0, %v852
        %v854 = vpop.f32.mrf.mxu0
        %v855 = vadd.f32 0.0, %v854
        %856 = vmatmul.bf16.gmra.mxu0 %v700
        %v857 = vpop.f32.mrf.mxu0
        %v858 = vadd.f32 0.0, %v857
        %v859 = vpop.f32.mrf.mxu0
        %v860 = vadd.f32 0.0, %v859
        %861 = vdwg.mxu0
        %v862 = vpack.c.bf16 %v845, %v843
        %v863 = vpack.c.bf16 %v850, %v848
        %v864 = vpack.c.bf16 %v855, %v853
        %v865 = vpack.c.bf16 %v860, %v858
        %866 = vmatpush.bf16.msra.mxu0 0
        %867 = vmatpush.bf16.msra.mxu0 0
        %868 = vmatpush.bf16.msra.mxu0 0
        %869 = vmatpush.bf16.msra.mxu0 0
        %870 = vmatpush.bf16.msra.mxu0 %v828
        %871 = vmatpush.bf16.msra.mxu0 %v827
        %872 = vmatpush.bf16.msra.mxu0 %v826
        %873 = vmatpush.bf16.msra.mxu0 %v825
        %874 = vmatmul.bf16.gmra.mxu0 %v765
        %v875 = vpop.f32.mrf.mxu0
        %v876 = vadd.f32 0.0, %v875
        %v877 = vpop.f32.mrf.mxu0
        %v878 = vadd.f32 0.0, %v877
        %879 = vmatmul.bf16.gmra.mxu0 %v768
        %v880 = vpop.f32.mrf.mxu0
        %v881 = vadd.f32 0.0, %v880
        %v882 = vpop.f32.mrf.mxu0
        %v883 = vadd.f32 0.0, %v882
        %884 = vmatmul.bf16.gmra.mxu0 %v771
        %v885 = vpop.f32.mrf.mxu0
        %v886 = vadd.f32 0.0, %v885
        %v887 = vpop.f32.mrf.mxu0
        %v888 = vadd.f32 0.0, %v887
        %889 = vmatmul.bf16.gmra.mxu0 %v774
        %v890 = vpop.f32.mrf.mxu0
        %v891 = vadd.f32 0.0, %v890
        %v892 = vpop.f32.mrf.mxu0
        %v893 = vadd.f32 0.0, %v892
        %894 = vdwg.mxu0
        %v895 = vpack.c.bf16 %v878, %v876
        %v896 = vpack.c.bf16 %v883, %v881
        %v897 = vpack.c.bf16 %v888, %v886
        %v898 = vpack.c.bf16 %v893, %v891
        %v899 = vld [vmem:[%s4] sm:$0xf]
        %v900 = vld [vmem:[%s4 + $0x4] sm:$0xf]
        %v901 = vld [vmem:[%s4 + $0x8] sm:$0xf]
        %v902 = vld [vmem:[%s4 + $0xc] sm:$0xf]
        %v903 = vld [vmem:[%s4 + $0x10] sm:$0xf]
        %v904 = vld [vmem:[%s4 + $0x14] sm:$0xf]
        %v905 = vld [vmem:[%s4 + $0x18] sm:$0xf]
        %v906 = vld [vmem:[%s4 + $0x1c] sm:$0xf]
        %v907 = vld [vmem:[%s5] sm:$0xf]
        %v908 = vld [vmem:[%s5 + $0x4] sm:$0xf]
        %v909 = vld [vmem:[%s5 + $0x8] sm:$0xf]
        %v910 = vld [vmem:[%s5 + $0xc] sm:$0xf]
        %v911 = vld [vmem:[%s5 + $0x10] sm:$0xf]
        %v912 = vld [vmem:[%s5 + $0x14] sm:$0xf]
        %v913 = vld [vmem:[%s5 + $0x18] sm:$0xf]
        %v914 = vld [vmem:[%s5 + $0x1c] sm:$0xf]
        %v915 = vld [vmem:[%s5 + $0x20] sm:$0xf]
        %v916 = vld [vmem:[%s5 + $0x24] sm:$0xf]
        %v917 = vld [vmem:[%s5 + $0x28] sm:$0xf]
        %v918 = vld [vmem:[%s5 + $0x2c] sm:$0xf]
        %v919 = vld [vmem:[%s5 + $0x30] sm:$0xf]
        %v920 = vld [vmem:[%s5 + $0x34] sm:$0xf]
        %v921 = vld [vmem:[%s5 + $0x38] sm:$0xf]
        %v922 = vld [vmem:[%s5 + $0x3c] sm:$0xf]
        %v939 = vunpack.c.l.b16 %v907
        %v940 = vunpack.c.l.b16 %v908
        %v941 = vunpack.c.l.b16 %v909
        %v942 = vunpack.c.l.b16 %v910
        %v943 = vunpack.c.l.b16 %v911
        %v944 = vunpack.c.l.b16 %v912
        %v945 = vunpack.c.l.b16 %v913
        %v946 = vunpack.c.l.b16 %v914
        %v947 = vunpack.c.l.b16 %v915
        %v948 = vunpack.c.l.b16 %v916
        %v949 = vunpack.c.l.b16 %v917
        %v950 = vunpack.c.l.b16 %v918
        %v951 = vunpack.c.l.b16 %v919
        %v952 = vunpack.c.l.b16 %v920
        %v953 = vunpack.c.l.b16 %v921
        %v954 = vunpack.c.l.b16 %v922
        %v955 = vpack.c.b16 %v940, %v939
        %v956 = vpack.c.b16 %v942, %v941
        %v957 = vpack.c.b16 %v944, %v943
        %v958 = vpack.c.b16 %v946, %v945
        %v959 = vpack.c.b16 %v948, %v947
        %v960 = vpack.c.b16 %v950, %v949
        %v961 = vpack.c.b16 %v952, %v951
        %v962 = vpack.c.b16 %v954, %v953
        %971 = vmatpush.bf16.msra.mxu0 %v962
        %972 = vmatpush.bf16.msra.mxu0 %v961
        %973 = vmatpush.bf16.msra.mxu0 %v960
        %974 = vmatpush.bf16.msra.mxu0 %v959
        %975 = vmatpush.bf16.msra.mxu0 %v958
        %976 = vmatpush.bf16.msra.mxu0 %v957
        %977 = vmatpush.bf16.msra.mxu0 %v956
        %978 = vmatpush.bf16.msra.mxu0 %v955
        %979 = vmatmul.bf16.gmra.mxu0 %v862
        %v980 = vpop.f32.mrf.mxu0
        %v981 = vadd.f32 0.0, %v980
        %v982 = vpop.f32.mrf.mxu0
        %v983 = vadd.f32 0.0, %v982
        %984 = vmatmul.bf16.gmra.mxu0 %v863
        %v985 = vpop.f32.mrf.mxu0
        %v986 = vadd.f32 0.0, %v985
        %v987 = vpop.f32.mrf.mxu0
        %v988 = vadd.f32 0.0, %v987
        %989 = vmatmul.bf16.gmra.mxu0 %v864
        %v990 = vpop.f32.mrf.mxu0
        %v991 = vadd.f32 0.0, %v990
        %v992 = vpop.f32.mrf.mxu0
        %v993 = vadd.f32 0.0, %v992
        %994 = vmatmul.bf16.gmra.mxu0 %v865
        %v995 = vpop.f32.mrf.mxu0
        %v996 = vadd.f32 0.0, %v995
        %v997 = vpop.f32.mrf.mxu0
        %v998 = vadd.f32 0.0, %v997
        %999 = vdwg.mxu0
        %v1008 = vunpack.c.l.b16 %v899
        %v1009 = vunpack.c.l.b16 %v900
        %v1010 = vunpack.c.l.b16 %v901
        %v1011 = vunpack.c.l.b16 %v902
        %v1012 = vunpack.c.l.b16 %v903
        %v1013 = vunpack.c.l.b16 %v904
        %v1014 = vunpack.c.l.b16 %v905
        %v1015 = vunpack.c.l.b16 %v906
        %v1016 = vpack.c.b16 %v1009, %v1008
        %v1017 = vpack.c.b16 %v1011, %v1010
        %v1018 = vpack.c.b16 %v1013, %v1012
        %v1019 = vpack.c.b16 %v1015, %v1014
        %v1025 = vsel %vm689, %v731, 0
        %v1028 = vsel %vm689, %v732, 0
        %v1031 = vsel %vm689, %v733, 0
        %v1034 = vsel %vm689, %v734, 0
        %1036 = vmatpush.bf16.msra.mxu0 0
        %1037 = vmatpush.bf16.msra.mxu0 0
        %1038 = vmatpush.bf16.msra.mxu0 0
        %1039 = vmatpush.bf16.msra.mxu0 0
        %1040 = vmatpush.bf16.msra.mxu0 %v1019
        %1041 = vmatpush.bf16.msra.mxu0 %v1018
        %1042 = vmatpush.bf16.msra.mxu0 %v1017
        %1043 = vmatpush.bf16.msra.mxu0 %v1016
        %1044 = vmatmul.bf16.gmra.mxu0 %v1025
        %v1045 = vpop.f32.mrf.mxu0
        %v1046 = vadd.f32 %v981, %v1045
        %v1047 = vpop.f32.mrf.mxu0
        %v1048 = vadd.f32 %v983, %v1047
        %1049 = vmatmul.bf16.gmra.mxu0 %v1028
        %v1050 = vpop.f32.mrf.mxu0
        %v1051 = vadd.f32 %v986, %v1050
        %v1052 = vpop.f32.mrf.mxu0
        %v1053 = vadd.f32 %v988, %v1052
        %1054 = vmatmul.bf16.gmra.mxu0 %v1031
        %v1055 = vpop.f32.mrf.mxu0
        %v1056 = vadd.f32 %v991, %v1055
        %v1057 = vpop.f32.mrf.mxu0
        %v1058 = vadd.f32 %v993, %v1057
        %1059 = vmatmul.bf16.gmra.mxu0 %v1034
        %v1060 = vpop.f32.mrf.mxu0
        %v1061 = vadd.f32 %v996, %v1060
        %v1062 = vpop.f32.mrf.mxu0
        %v1063 = vadd.f32 %v998, %v1062
        %1064 = vdwg.mxu0
        %s1065 = scalar_lea.vmem %s4, 32
        %v1066 = vld [vmem:[%s1065] sm:$0xf]
        %v1067 = vld [vmem:[%s1065 + $0x4] sm:$0xf]
        %v1068 = vld [vmem:[%s1065 + $0x8] sm:$0xf]
        %v1069 = vld [vmem:[%s1065 + $0xc] sm:$0xf]
        %v1070 = vld [vmem:[%s1065 + $0x10] sm:$0xf]
        %v1071 = vld [vmem:[%s1065 + $0x14] sm:$0xf]
        %v1072 = vld [vmem:[%s1065 + $0x18] sm:$0xf]
        %v1073 = vld [vmem:[%s1065 + $0x1c] sm:$0xf]
        %v1082 = vunpack.c.l.b16 %v1066
        %v1083 = vunpack.c.l.b16 %v1067
        %v1084 = vunpack.c.l.b16 %v1068
        %v1085 = vunpack.c.l.b16 %v1069
        %v1086 = vunpack.c.l.b16 %v1070
        %v1087 = vunpack.c.l.b16 %v1071
        %v1088 = vunpack.c.l.b16 %v1072
        %v1089 = vunpack.c.l.b16 %v1073
        %v1090 = vpack.c.b16 %v1083, %v1082
        %v1091 = vpack.c.b16 %v1085, %v1084
        %v1092 = vpack.c.b16 %v1087, %v1086
        %v1093 = vpack.c.b16 %v1089, %v1088
        %v1099 = vsel %vm689, %v649, 0
        %v1102 = vsel %vm689, %v650, 0
        %v1105 = vsel %vm689, %v651, 0
        %v1108 = vsel %vm689, %v652, 0
        %1110 = vmatpush.bf16.msra.mxu0 0
        %1111 = vmatpush.bf16.msra.mxu0 0
        %1112 = vmatpush.bf16.msra.mxu0 0
        %1113 = vmatpush.bf16.msra.mxu0 0
        %1114 = vmatpush.bf16.msra.mxu0 %v1093
        %1115 = vmatpush.bf16.msra.mxu0 %v1092
        %1116 = vmatpush.bf16.msra.mxu0 %v1091
        %1117 = vmatpush.bf16.msra.mxu0 %v1090
        %1118 = vmatmul.bf16.gmra.mxu0 %v1099
        %v1119 = vpop.f32.mrf.mxu0
        %v1120 = vadd.f32 0.0, %v1119
        %v1121 = vpop.f32.mrf.mxu0
        %v1122 = vadd.f32 0.0, %v1121
        %1123 = vmatmul.bf16.gmra.mxu0 %v1102
        %v1124 = vpop.f32.mrf.mxu0
        %v1125 = vadd.f32 0.0, %v1124
        %v1126 = vpop.f32.mrf.mxu0
        %v1127 = vadd.f32 0.0, %v1126
        %1128 = vmatmul.bf16.gmra.mxu0 %v1105
        %v1129 = vpop.f32.mrf.mxu0
        %v1130 = vadd.f32 0.0, %v1129
        %v1131 = vpop.f32.mrf.mxu0
        %v1132 = vadd.f32 0.0, %v1131
        %1133 = vmatmul.bf16.gmra.mxu0 %v1108
        %v1134 = vpop.f32.mrf.mxu0
        %v1135 = vadd.f32 0.0, %v1134
        %v1136 = vpop.f32.mrf.mxu0
        %v1137 = vadd.f32 0.0, %v1136
        %1138 = vdwg.mxu0
        %v1139 = vadd.f32 %v1046, %v1120
        %v1140 = vadd.f32 %v1048, %v1122
        %v1141 = vadd.f32 %v1051, %v1125
        %v1142 = vadd.f32 %v1053, %v1127
        %v1143 = vadd.f32 %v1056, %v1130
        %v1144 = vadd.f32 %v1058, %v1132
        %v1145 = vadd.f32 %v1061, %v1135
        %v1146 = vadd.f32 %v1063, %v1137
        %s1147 = scalar_lea.vmem %s5, 64
        %v1148 = vld [vmem:[%s1147] sm:$0xf]
        %v1149 = vld [vmem:[%s1147 + $0x4] sm:$0xf]
        %v1150 = vld [vmem:[%s1147 + $0x8] sm:$0xf]
        %v1151 = vld [vmem:[%s1147 + $0xc] sm:$0xf]
        %v1152 = vld [vmem:[%s1147 + $0x10] sm:$0xf]
        %v1153 = vld [vmem:[%s1147 + $0x14] sm:$0xf]
        %v1154 = vld [vmem:[%s1147 + $0x18] sm:$0xf]
        %v1155 = vld [vmem:[%s1147 + $0x1c] sm:$0xf]
        %v1156 = vld [vmem:[%s1147 + $0x20] sm:$0xf]
        %v1157 = vld [vmem:[%s1147 + $0x24] sm:$0xf]
        %v1158 = vld [vmem:[%s1147 + $0x28] sm:$0xf]
        %v1159 = vld [vmem:[%s1147 + $0x2c] sm:$0xf]
        %v1160 = vld [vmem:[%s1147 + $0x30] sm:$0xf]
        %v1161 = vld [vmem:[%s1147 + $0x34] sm:$0xf]
        %v1162 = vld [vmem:[%s1147 + $0x38] sm:$0xf]
        %v1163 = vld [vmem:[%s1147 + $0x3c] sm:$0xf]
        %v1180 = vunpack.c.l.b16 %v1148
        %v1181 = vunpack.c.l.b16 %v1149
        %v1182 = vunpack.c.l.b16 %v1150
        %v1183 = vunpack.c.l.b16 %v1151
        %v1184 = vunpack.c.l.b16 %v1152
        %v1185 = vunpack.c.l.b16 %v1153
        %v1186 = vunpack.c.l.b16 %v1154
        %v1187 = vunpack.c.l.b16 %v1155
        %v1188 = vunpack.c.l.b16 %v1156
        %v1189 = vunpack.c.l.b16 %v1157
        %v1190 = vunpack.c.l.b16 %v1158
        %v1191 = vunpack.c.l.b16 %v1159
        %v1192 = vunpack.c.l.b16 %v1160
        %v1193 = vunpack.c.l.b16 %v1161
        %v1194 = vunpack.c.l.b16 %v1162
        %v1195 = vunpack.c.l.b16 %v1163
        %v1196 = vpack.c.b16 %v1181, %v1180
        %v1197 = vpack.c.b16 %v1183, %v1182
        %v1198 = vpack.c.b16 %v1185, %v1184
        %v1199 = vpack.c.b16 %v1187, %v1186
        %v1200 = vpack.c.b16 %v1189, %v1188
        %v1201 = vpack.c.b16 %v1191, %v1190
        %v1202 = vpack.c.b16 %v1193, %v1192
        %v1203 = vpack.c.b16 %v1195, %v1194
        %1212 = vmatpush.bf16.msra.mxu0 %v1203
        %1213 = vmatpush.bf16.msra.mxu0 %v1202
        %1214 = vmatpush.bf16.msra.mxu0 %v1201
        %1215 = vmatpush.bf16.msra.mxu0 %v1200
        %1216 = vmatpush.bf16.msra.mxu0 %v1199
        %1217 = vmatpush.bf16.msra.mxu0 %v1198
        %1218 = vmatpush.bf16.msra.mxu0 %v1197
        %1219 = vmatpush.bf16.msra.mxu0 %v1196
        %1220 = vmatmul.bf16.gmra.mxu0 %v825
        %v1221 = vpop.f32.mrf.mxu0
        %v1222 = vadd.f32 0.0, %v1221
        %v1223 = vpop.f32.mrf.mxu0
        %v1224 = vadd.f32 0.0, %v1223
        %1225 = vmatmul.bf16.gmra.mxu0 %v826
        %v1226 = vpop.f32.mrf.mxu0
        %v1227 = vadd.f32 0.0, %v1226
        %v1228 = vpop.f32.mrf.mxu0
        %v1229 = vadd.f32 0.0, %v1228
        %1230 = vmatmul.bf16.gmra.mxu0 %v827
        %v1231 = vpop.f32.mrf.mxu0
        %v1232 = vadd.f32 0.0, %v1231
        %v1233 = vpop.f32.mrf.mxu0
        %v1234 = vadd.f32 0.0, %v1233
        %1235 = vmatmul.bf16.gmra.mxu0 %v828
        %v1236 = vpop.f32.mrf.mxu0
        %v1237 = vadd.f32 0.0, %v1236
        %v1238 = vpop.f32.mrf.mxu0
        %v1239 = vadd.f32 0.0, %v1238
        %1240 = vdwg.mxu0
        %v1241 = vadd.f32 %v1139, %v1222
        %v1242 = vadd.f32 %v1140, %v1224
        %v1243 = vadd.f32 %v1141, %v1227
        %v1244 = vadd.f32 %v1142, %v1229
        %v1245 = vadd.f32 %v1143, %v1232
        %v1246 = vadd.f32 %v1144, %v1234
        %v1247 = vadd.f32 %v1145, %v1237
        %v1248 = vadd.f32 %v1146, %v1239
        %s1249 = scalar_lea.vmem %s4, 64
        %v1250 = vld [vmem:[%s1249] sm:$0xf]
        %v1251 = vld [vmem:[%s1249 + $0x4] sm:$0xf]
        %v1252 = vld [vmem:[%s1249 + $0x8] sm:$0xf]
        %v1253 = vld [vmem:[%s1249 + $0xc] sm:$0xf]
        %v1254 = vld [vmem:[%s1249 + $0x10] sm:$0xf]
        %v1255 = vld [vmem:[%s1249 + $0x14] sm:$0xf]
        %v1256 = vld [vmem:[%s1249 + $0x18] sm:$0xf]
        %v1257 = vld [vmem:[%s1249 + $0x1c] sm:$0xf]
        %v1266 = vunpack.c.l.b16 %v1250
        %v1267 = vunpack.c.l.b16 %v1251
        %v1268 = vunpack.c.l.b16 %v1252
        %v1269 = vunpack.c.l.b16 %v1253
        %v1270 = vunpack.c.l.b16 %v1254
        %v1271 = vunpack.c.l.b16 %v1255
        %v1272 = vunpack.c.l.b16 %v1256
        %v1273 = vunpack.c.l.b16 %v1257
        %v1274 = vpack.c.b16 %v1267, %v1266
        %v1275 = vpack.c.b16 %v1269, %v1268
        %v1276 = vpack.c.b16 %v1271, %v1270
        %v1277 = vpack.c.b16 %v1273, %v1272
        %v1283 = vsel %vm689, %v805, 0
        %v1286 = vsel %vm689, %v806, 0
        %v1289 = vsel %vm689, %v807, 0
        %v1292 = vsel %vm689, %v808, 0
        %1294 = vmatpush.bf16.msra.mxu0 0
        %1295 = vmatpush.bf16.msra.mxu0 0
        %1296 = vmatpush.bf16.msra.mxu0 0
        %1297 = vmatpush.bf16.msra.mxu0 0
        %1298 = vmatpush.bf16.msra.mxu0 %v1277
        %1299 = vmatpush.bf16.msra.mxu0 %v1276
        %1300 = vmatpush.bf16.msra.mxu0 %v1275
        %1301 = vmatpush.bf16.msra.mxu0 %v1274
        %1302 = vmatmul.bf16.gmra.mxu0 %v1283
        %v1303 = vpop.f32.mrf.mxu0
        %v1304 = vadd.f32 0.0, %v1303
        %v1305 = vpop.f32.mrf.mxu0
        %v1306 = vadd.f32 0.0, %v1305
        %1307 = vmatmul.bf16.gmra.mxu0 %v1286
        %v1308 = vpop.f32.mrf.mxu0
        %v1309 = vadd.f32 0.0, %v1308
        %v1310 = vpop.f32.mrf.mxu0
        %v1311 = vadd.f32 0.0, %v1310
        %1312 = vmatmul.bf16.gmra.mxu0 %v1289
        %v1313 = vpop.f32.mrf.mxu0
        %v1314 = vadd.f32 0.0, %v1313
        %v1315 = vpop.f32.mrf.mxu0
        %v1316 = vadd.f32 0.0, %v1315
        %1317 = vmatmul.bf16.gmra.mxu0 %v1292
        %v1318 = vpop.f32.mrf.mxu0
        %v1319 = vadd.f32 0.0, %v1318
        %v1320 = vpop.f32.mrf.mxu0
        %v1321 = vadd.f32 0.0, %v1320
        %1322 = vdwg.mxu0
        %v1323 = vadd.f32 %v1241, %v1304
        %v1324 = vadd.f32 %v1242, %v1306
        %v1325 = vadd.f32 %v1243, %v1309
        %v1326 = vadd.f32 %v1244, %v1311
        %v1327 = vadd.f32 %v1245, %v1314
        %v1328 = vadd.f32 %v1246, %v1316
        %v1329 = vadd.f32 %v1247, %v1319
        %v1330 = vadd.f32 %v1248, %v1321
        %s1331 = scalar_lea.vmem %s5, 128
        %v1332 = vld [vmem:[%s1331] sm:$0xf]
        %v1333 = vld [vmem:[%s1331 + $0x4] sm:$0xf]
        %v1334 = vld [vmem:[%s1331 + $0x8] sm:$0xf]
        %v1335 = vld [vmem:[%s1331 + $0xc] sm:$0xf]
        %v1336 = vld [vmem:[%s1331 + $0x10] sm:$0xf]
        %v1337 = vld [vmem:[%s1331 + $0x14] sm:$0xf]
        %v1338 = vld [vmem:[%s1331 + $0x18] sm:$0xf]
        %v1339 = vld [vmem:[%s1331 + $0x1c] sm:$0xf]
        %v1340 = vld [vmem:[%s1331 + $0x20] sm:$0xf]
        %v1341 = vld [vmem:[%s1331 + $0x24] sm:$0xf]
        %v1342 = vld [vmem:[%s1331 + $0x28] sm:$0xf]
        %v1343 = vld [vmem:[%s1331 + $0x2c] sm:$0xf]
        %v1344 = vld [vmem:[%s1331 + $0x30] sm:$0xf]
        %v1345 = vld [vmem:[%s1331 + $0x34] sm:$0xf]
        %v1346 = vld [vmem:[%s1331 + $0x38] sm:$0xf]
        %v1347 = vld [vmem:[%s1331 + $0x3c] sm:$0xf]
        %v1364 = vunpack.c.l.b16 %v1332
        %v1365 = vunpack.c.l.b16 %v1333
        %v1366 = vunpack.c.l.b16 %v1334
        %v1367 = vunpack.c.l.b16 %v1335
        %v1368 = vunpack.c.l.b16 %v1336
        %v1369 = vunpack.c.l.b16 %v1337
        %v1370 = vunpack.c.l.b16 %v1338
        %v1371 = vunpack.c.l.b16 %v1339
        %v1372 = vunpack.c.l.b16 %v1340
        %v1373 = vunpack.c.l.b16 %v1341
        %v1374 = vunpack.c.l.b16 %v1342
        %v1375 = vunpack.c.l.b16 %v1343
        %v1376 = vunpack.c.l.b16 %v1344
        %v1377 = vunpack.c.l.b16 %v1345
        %v1378 = vunpack.c.l.b16 %v1346
        %v1379 = vunpack.c.l.b16 %v1347
        %v1380 = vpack.c.b16 %v1365, %v1364
        %v1381 = vpack.c.b16 %v1367, %v1366
        %v1382 = vpack.c.b16 %v1369, %v1368
        %v1383 = vpack.c.b16 %v1371, %v1370
        %v1384 = vpack.c.b16 %v1373, %v1372
        %v1385 = vpack.c.b16 %v1375, %v1374
        %v1386 = vpack.c.b16 %v1377, %v1376
        %v1387 = vpack.c.b16 %v1379, %v1378
        %1396 = vmatpush.bf16.msra.mxu0 %v1387
        %1397 = vmatpush.bf16.msra.mxu0 %v1386
        %1398 = vmatpush.bf16.msra.mxu0 %v1385
        %1399 = vmatpush.bf16.msra.mxu0 %v1384
        %1400 = vmatpush.bf16.msra.mxu0 %v1383
        %1401 = vmatpush.bf16.msra.mxu0 %v1382
        %1402 = vmatpush.bf16.msra.mxu0 %v1381
        %1403 = vmatpush.bf16.msra.mxu0 %v1380
        %1404 = vmatmul.bf16.gmra.mxu0 %v895
        %v1405 = vpop.f32.mrf.mxu0
        %v1406 = vadd.f32 0.0, %v1405
        %v1407 = vpop.f32.mrf.mxu0
        %v1408 = vadd.f32 0.0, %v1407
        %1409 = vmatmul.bf16.gmra.mxu0 %v896
        %v1410 = vpop.f32.mrf.mxu0
        %v1411 = vadd.f32 0.0, %v1410
        %v1412 = vpop.f32.mrf.mxu0
        %v1413 = vadd.f32 0.0, %v1412
        %1414 = vmatmul.bf16.gmra.mxu0 %v897
        %v1415 = vpop.f32.mrf.mxu0
        %v1416 = vadd.f32 0.0, %v1415
        %v1417 = vpop.f32.mrf.mxu0
        %v1418 = vadd.f32 0.0, %v1417
        %1419 = vmatmul.bf16.gmra.mxu0 %v898
        %v1420 = vpop.f32.mrf.mxu0
        %v1421 = vadd.f32 0.0, %v1420
        %v1422 = vpop.f32.mrf.mxu0
        %v1423 = vadd.f32 0.0, %v1422
        %1424 = vdwg.mxu0
        %v1425 = vadd.f32 %v1323, %v1406
        %v1426 = vadd.f32 %v1324, %v1408
        %v1427 = vadd.f32 %v1325, %v1411
        %v1428 = vadd.f32 %v1326, %v1413
        %v1429 = vadd.f32 %v1327, %v1416
        %v1430 = vadd.f32 %v1328, %v1418
        %v1431 = vadd.f32 %v1329, %v1421
        %v1432 = vadd.f32 %v1330, %v1423
        %v1433 = vld [vmem:[%s7] sm:$0xff]
        %v1434 = vld [vmem:[%s7 + $0x8] sm:$0xff]
        %v1435 = vld [vmem:[%s7 + $0x10] sm:$0xff]
        %v1436 = vld [vmem:[%s7 + $0x18] sm:$0xff]
        %v1437 = vld [vmem:[%s7 + $0x20] sm:$0xff]
        %v1438 = vld [vmem:[%s7 + $0x28] sm:$0xff]
        %v1439 = vld [vmem:[%s7 + $0x30] sm:$0xff]
        %v1440 = vld [vmem:[%s7 + $0x38] sm:$0xff]
        %s1441 = scalar_lea.vmem %s4, 96
        %v1442 = vld [vmem:[%s1441] sm:$0xf]
        %v1443 = vld [vmem:[%s1441 + $0x4] sm:$0xf]
        %v1444 = vld [vmem:[%s1441 + $0x8] sm:$0xf]
        %v1445 = vld [vmem:[%s1441 + $0xc] sm:$0xf]
        %v1446 = vld [vmem:[%s1441 + $0x10] sm:$0xf]
        %v1447 = vld [vmem:[%s1441 + $0x14] sm:$0xf]
        %v1448 = vld [vmem:[%s1441 + $0x18] sm:$0xf]
        %v1449 = vld [vmem:[%s1441 + $0x1c] sm:$0xf]
        %s1450 = scalar_lea.vmem %s5, 192
        %v1451 = vld [vmem:[%s1450] sm:$0xf]
        %v1452 = vld [vmem:[%s1450 + $0x4] sm:$0xf]
        %v1453 = vld [vmem:[%s1450 + $0x8] sm:$0xf]
        %v1454 = vld [vmem:[%s1450 + $0xc] sm:$0xf]
        %v1455 = vld [vmem:[%s1450 + $0x10] sm:$0xf]
        %v1456 = vld [vmem:[%s1450 + $0x14] sm:$0xf]
        %v1457 = vld [vmem:[%s1450 + $0x18] sm:$0xf]
        %v1458 = vld [vmem:[%s1450 + $0x1c] sm:$0xf]
        %v1459 = vld [vmem:[%s1450 + $0x20] sm:$0xf]
        %v1460 = vld [vmem:[%s1450 + $0x24] sm:$0xf]
        %v1461 = vld [vmem:[%s1450 + $0x28] sm:$0xf]
        %v1462 = vld [vmem:[%s1450 + $0x2c] sm:$0xf]
        %v1463 = vld [vmem:[%s1450 + $0x30] sm:$0xf]
        %v1464 = vld [vmem:[%s1450 + $0x34] sm:$0xf]
        %v1465 = vld [vmem:[%s1450 + $0x38] sm:$0xf]
        %v1466 = vld [vmem:[%s1450 + $0x3c] sm:$0xf]
        %v1483 = vunpack.c.l.b16 %v1451
        %v1484 = vunpack.c.l.b16 %v1452
        %v1485 = vunpack.c.l.b16 %v1453
        %v1486 = vunpack.c.l.b16 %v1454
        %v1487 = vunpack.c.l.b16 %v1455
        %v1488 = vunpack.c.l.b16 %v1456
        %v1489 = vunpack.c.l.b16 %v1457
        %v1490 = vunpack.c.l.b16 %v1458
        %v1491 = vunpack.c.l.b16 %v1459
        %v1492 = vunpack.c.l.b16 %v1460
        %v1493 = vunpack.c.l.b16 %v1461
        %v1494 = vunpack.c.l.b16 %v1462
        %v1495 = vunpack.c.l.b16 %v1463
        %v1496 = vunpack.c.l.b16 %v1464
        %v1497 = vunpack.c.l.b16 %v1465
        %v1498 = vunpack.c.l.b16 %v1466
        %v1499 = vpack.c.b16 %v1484, %v1483
        %v1500 = vpack.c.b16 %v1486, %v1485
        %v1501 = vpack.c.b16 %v1488, %v1487
        %v1502 = vpack.c.b16 %v1490, %v1489
        %v1503 = vpack.c.b16 %v1492, %v1491
        %v1504 = vpack.c.b16 %v1494, %v1493
        %v1505 = vpack.c.b16 %v1496, %v1495
        %v1506 = vpack.c.b16 %v1498, %v1497
        %1515 = vmatpush.bf16.msra.mxu0 %v1506
        %1516 = vmatpush.bf16.msra.mxu0 %v1505
        %1517 = vmatpush.bf16.msra.mxu0 %v1504
        %1518 = vmatpush.bf16.msra.mxu0 %v1503
        %1519 = vmatpush.bf16.msra.mxu0 %v1502
        %1520 = vmatpush.bf16.msra.mxu0 %v1501
        %1521 = vmatpush.bf16.msra.mxu0 %v1500
        %1522 = vmatpush.bf16.msra.mxu0 %v1499
        %1523 = vmatmul.bf16.gmra.mxu0 %v862
        %v1524 = vpop.f32.mrf.mxu0
        %v1525 = vadd.f32 0.0, %v1524
        %v1526 = vpop.f32.mrf.mxu0
        %v1527 = vadd.f32 0.0, %v1526
        %1528 = vmatmul.bf16.gmra.mxu0 %v863
        %v1529 = vpop.f32.mrf.mxu0
        %v1530 = vadd.f32 0.0, %v1529
        %v1531 = vpop.f32.mrf.mxu0
        %v1532 = vadd.f32 0.0, %v1531
        %1533 = vmatmul.bf16.gmra.mxu0 %v864
        %v1534 = vpop.f32.mrf.mxu0
        %v1535 = vadd.f32 0.0, %v1534
        %v1536 = vpop.f32.mrf.mxu0
        %v1537 = vadd.f32 0.0, %v1536
        %1538 = vmatmul.bf16.gmra.mxu0 %v865
        %v1539 = vpop.f32.mrf.mxu0
        %v1540 = vadd.f32 0.0, %v1539
        %v1541 = vpop.f32.mrf.mxu0
        %v1542 = vadd.f32 0.0, %v1541
        %1543 = vdwg.mxu0
        %v1552 = vunpack.c.l.b16 %v1442
        %v1553 = vunpack.c.l.b16 %v1443
        %v1554 = vunpack.c.l.b16 %v1444
        %v1555 = vunpack.c.l.b16 %v1445
        %v1556 = vunpack.c.l.b16 %v1446
        %v1557 = vunpack.c.l.b16 %v1447
        %v1558 = vunpack.c.l.b16 %v1448
        %v1559 = vunpack.c.l.b16 %v1449
        %v1560 = vpack.c.b16 %v1553, %v1552
        %v1561 = vpack.c.b16 %v1555, %v1554
        %v1562 = vpack.c.b16 %v1557, %v1556
        %v1563 = vpack.c.b16 %v1559, %v1558
        %1568 = vmatpush.bf16.msra.mxu0 0
        %1569 = vmatpush.bf16.msra.mxu0 0
        %1570 = vmatpush.bf16.msra.mxu0 0
        %1571 = vmatpush.bf16.msra.mxu0 0
        %1572 = vmatpush.bf16.msra.mxu0 %v1563
        %1573 = vmatpush.bf16.msra.mxu0 %v1562
        %1574 = vmatpush.bf16.msra.mxu0 %v1561
        %1575 = vmatpush.bf16.msra.mxu0 %v1560
        %1576 = vmatmul.bf16.gmra.mxu0 %v1025
        %v1577 = vpop.f32.mrf.mxu0
        %v1578 = vadd.f32 %v1525, %v1577
        %v1579 = vpop.f32.mrf.mxu0
        %v1580 = vadd.f32 %v1527, %v1579
        %1581 = vmatmul.bf16.gmra.mxu0 %v1028
        %v1582 = vpop.f32.mrf.mxu0
        %v1583 = vadd.f32 %v1530, %v1582
        %v1584 = vpop.f32.mrf.mxu0
        %v1585 = vadd.f32 %v1532, %v1584
        %1586 = vmatmul.bf16.gmra.mxu0 %v1031
        %v1587 = vpop.f32.mrf.mxu0
        %v1588 = vadd.f32 %v1535, %v1587
        %v1589 = vpop.f32.mrf.mxu0
        %v1590 = vadd.f32 %v1537, %v1589
        %1591 = vmatmul.bf16.gmra.mxu0 %v1034
        %v1592 = vpop.f32.mrf.mxu0
        %v1593 = vadd.f32 %v1540, %v1592
        %v1594 = vpop.f32.mrf.mxu0
        %v1595 = vadd.f32 %v1542, %v1594
        %1596 = vdwg.mxu0
        %s1597 = scalar_lea.vmem %s4, 128
        %v1598 = vld [vmem:[%s1597] sm:$0xf]
        %v1599 = vld [vmem:[%s1597 + $0x4] sm:$0xf]
        %v1600 = vld [vmem:[%s1597 + $0x8] sm:$0xf]
        %v1601 = vld [vmem:[%s1597 + $0xc] sm:$0xf]
        %v1602 = vld [vmem:[%s1597 + $0x10] sm:$0xf]
        %v1603 = vld [vmem:[%s1597 + $0x14] sm:$0xf]
        %v1604 = vld [vmem:[%s1597 + $0x18] sm:$0xf]
        %v1605 = vld [vmem:[%s1597 + $0x1c] sm:$0xf]
        %v1614 = vunpack.c.l.b16 %v1598
        %v1615 = vunpack.c.l.b16 %v1599
        %v1616 = vunpack.c.l.b16 %v1600
        %v1617 = vunpack.c.l.b16 %v1601
        %v1618 = vunpack.c.l.b16 %v1602
        %v1619 = vunpack.c.l.b16 %v1603
        %v1620 = vunpack.c.l.b16 %v1604
        %v1621 = vunpack.c.l.b16 %v1605
        %v1622 = vpack.c.b16 %v1615, %v1614
        %v1623 = vpack.c.b16 %v1617, %v1616
        %v1624 = vpack.c.b16 %v1619, %v1618
        %v1625 = vpack.c.b16 %v1621, %v1620
        %1630 = vmatpush.bf16.msra.mxu0 0
        %1631 = vmatpush.bf16.msra.mxu0 0
        %1632 = vmatpush.bf16.msra.mxu0 0
        %1633 = vmatpush.bf16.msra.mxu0 0
        %1634 = vmatpush.bf16.msra.mxu0 %v1625
        %1635 = vmatpush.bf16.msra.mxu0 %v1624
        %1636 = vmatpush.bf16.msra.mxu0 %v1623
        %1637 = vmatpush.bf16.msra.mxu0 %v1622
        %1638 = vmatmul.bf16.gmra.mxu0 %v1099
        %v1639 = vpop.f32.mrf.mxu0
        %v1640 = vadd.f32 0.0, %v1639
        %v1641 = vpop.f32.mrf.mxu0
        %v1642 = vadd.f32 0.0, %v1641
        %1643 = vmatmul.bf16.gmra.mxu0 %v1102
        %v1644 = vpop.f32.mrf.mxu0
        %v1645 = vadd.f32 0.0, %v1644
        %v1646 = vpop.f32.mrf.mxu0
        %v1647 = vadd.f32 0.0, %v1646
        %1648 = vmatmul.bf16.gmra.mxu0 %v1105
        %v1649 = vpop.f32.mrf.mxu0
        %v1650 = vadd.f32 0.0, %v1649
        %v1651 = vpop.f32.mrf.mxu0
        %v1652 = vadd.f32 0.0, %v1651
        %1653 = vmatmul.bf16.gmra.mxu0 %v1108
        %v1654 = vpop.f32.mrf.mxu0
        %v1655 = vadd.f32 0.0, %v1654
        %v1656 = vpop.f32.mrf.mxu0
        %v1657 = vadd.f32 0.0, %v1656
        %1658 = vdwg.mxu0
        %v1659 = vadd.f32 %v1578, %v1640
        %v1660 = vadd.f32 %v1580, %v1642
        %v1661 = vadd.f32 %v1583, %v1645
        %v1662 = vadd.f32 %v1585, %v1647
        %v1663 = vadd.f32 %v1588, %v1650
        %v1664 = vadd.f32 %v1590, %v1652
        %v1665 = vadd.f32 %v1593, %v1655
        %v1666 = vadd.f32 %v1595, %v1657
        %s1667 = scalar_lea.vmem %s5, 256
        %v1668 = vld [vmem:[%s1667] sm:$0xf]
        %v1669 = vld [vmem:[%s1667 + $0x4] sm:$0xf]
        %v1670 = vld [vmem:[%s1667 + $0x8] sm:$0xf]
        %v1671 = vld [vmem:[%s1667 + $0xc] sm:$0xf]
        %v1672 = vld [vmem:[%s1667 + $0x10] sm:$0xf]
        %v1673 = vld [vmem:[%s1667 + $0x14] sm:$0xf]
        %v1674 = vld [vmem:[%s1667 + $0x18] sm:$0xf]
        %v1675 = vld [vmem:[%s1667 + $0x1c] sm:$0xf]
        %v1676 = vld [vmem:[%s1667 + $0x20] sm:$0xf]
        %v1677 = vld [vmem:[%s1667 + $0x24] sm:$0xf]
        %v1678 = vld [vmem:[%s1667 + $0x28] sm:$0xf]
        %v1679 = vld [vmem:[%s1667 + $0x2c] sm:$0xf]
        %v1680 = vld [vmem:[%s1667 + $0x30] sm:$0xf]
        %v1681 = vld [vmem:[%s1667 + $0x34] sm:$0xf]
        %v1682 = vld [vmem:[%s1667 + $0x38] sm:$0xf]
        %v1683 = vld [vmem:[%s1667 + $0x3c] sm:$0xf]
        %v1700 = vunpack.c.l.b16 %v1668
        %v1701 = vunpack.c.l.b16 %v1669
        %v1702 = vunpack.c.l.b16 %v1670
        %v1703 = vunpack.c.l.b16 %v1671
        %v1704 = vunpack.c.l.b16 %v1672
        %v1705 = vunpack.c.l.b16 %v1673
        %v1706 = vunpack.c.l.b16 %v1674
        %v1707 = vunpack.c.l.b16 %v1675
        %v1708 = vunpack.c.l.b16 %v1676
        %v1709 = vunpack.c.l.b16 %v1677
        %v1710 = vunpack.c.l.b16 %v1678
        %v1711 = vunpack.c.l.b16 %v1679
        %v1712 = vunpack.c.l.b16 %v1680
        %v1713 = vunpack.c.l.b16 %v1681
        %v1714 = vunpack.c.l.b16 %v1682
        %v1715 = vunpack.c.l.b16 %v1683
        %v1716 = vpack.c.b16 %v1701, %v1700
        %v1717 = vpack.c.b16 %v1703, %v1702
        %v1718 = vpack.c.b16 %v1705, %v1704
        %v1719 = vpack.c.b16 %v1707, %v1706
        %v1720 = vpack.c.b16 %v1709, %v1708
        %v1721 = vpack.c.b16 %v1711, %v1710
        %v1722 = vpack.c.b16 %v1713, %v1712
        %v1723 = vpack.c.b16 %v1715, %v1714
        %1732 = vmatpush.bf16.msra.mxu0 %v1723
        %1733 = vmatpush.bf16.msra.mxu0 %v1722
        %1734 = vmatpush.bf16.msra.mxu0 %v1721
        %1735 = vmatpush.bf16.msra.mxu0 %v1720
        %1736 = vmatpush.bf16.msra.mxu0 %v1719
        %1737 = vmatpush.bf16.msra.mxu0 %v1718
        %1738 = vmatpush.bf16.msra.mxu0 %v1717
        %1739 = vmatpush.bf16.msra.mxu0 %v1716
        %1740 = vmatmul.bf16.gmra.mxu0 %v825
        %v1741 = vpop.f32.mrf.mxu0
        %v1742 = vadd.f32 0.0, %v1741
        %v1743 = vpop.f32.mrf.mxu0
        %v1744 = vadd.f32 0.0, %v1743
        %1745 = vmatmul.bf16.gmra.mxu0 %v826
        %v1746 = vpop.f32.mrf.mxu0
        %v1747 = vadd.f32 0.0, %v1746
        %v1748 = vpop.f32.mrf.mxu0
        %v1749 = vadd.f32 0.0, %v1748
        %1750 = vmatmul.bf16.gmra.mxu0 %v827
        %v1751 = vpop.f32.mrf.mxu0
        %v1752 = vadd.f32 0.0, %v1751
        %v1753 = vpop.f32.mrf.mxu0
        %v1754 = vadd.f32 0.0, %v1753
        %1755 = vmatmul.bf16.gmra.mxu0 %v828
        %v1756 = vpop.f32.mrf.mxu0
        %v1757 = vadd.f32 0.0, %v1756
        %v1758 = vpop.f32.mrf.mxu0
        %v1759 = vadd.f32 0.0, %v1758
        %1760 = vdwg.mxu0
        %v1761 = vadd.f32 %v1659, %v1742
        %v1762 = vadd.f32 %v1660, %v1744
        %v1763 = vadd.f32 %v1661, %v1747
        %v1764 = vadd.f32 %v1662, %v1749
        %v1765 = vadd.f32 %v1663, %v1752
        %v1766 = vadd.f32 %v1664, %v1754
        %v1767 = vadd.f32 %v1665, %v1757
        %v1768 = vadd.f32 %v1666, %v1759
        %s1769 = scalar_lea.vmem %s4, 160
        %v1770 = vld [vmem:[%s1769] sm:$0xf]
        %v1771 = vld [vmem:[%s1769 + $0x4] sm:$0xf]
        %v1772 = vld [vmem:[%s1769 + $0x8] sm:$0xf]
        %v1773 = vld [vmem:[%s1769 + $0xc] sm:$0xf]
        %v1774 = vld [vmem:[%s1769 + $0x10] sm:$0xf]
        %v1775 = vld [vmem:[%s1769 + $0x14] sm:$0xf]
        %v1776 = vld [vmem:[%s1769 + $0x18] sm:$0xf]
        %v1777 = vld [vmem:[%s1769 + $0x1c] sm:$0xf]
        %v1786 = vunpack.c.l.b16 %v1770
        %v1787 = vunpack.c.l.b16 %v1771
        %v1788 = vunpack.c.l.b16 %v1772
        %v1789 = vunpack.c.l.b16 %v1773
        %v1790 = vunpack.c.l.b16 %v1774
        %v1791 = vunpack.c.l.b16 %v1775
        %v1792 = vunpack.c.l.b16 %v1776
        %v1793 = vunpack.c.l.b16 %v1777
        %v1794 = vpack.c.b16 %v1787, %v1786
        %v1795 = vpack.c.b16 %v1789, %v1788
        %v1796 = vpack.c.b16 %v1791, %v1790
        %v1797 = vpack.c.b16 %v1793, %v1792
        %1802 = vmatpush.bf16.msra.mxu0 0
        %1803 = vmatpush.bf16.msra.mxu0 0
        %1804 = vmatpush.bf16.msra.mxu0 0
        %1805 = vmatpush.bf16.msra.mxu0 0
        %1806 = vmatpush.bf16.msra.mxu0 %v1797
        %1807 = vmatpush.bf16.msra.mxu0 %v1796
        %1808 = vmatpush.bf16.msra.mxu0 %v1795
        %1809 = vmatpush.bf16.msra.mxu0 %v1794
        %1810 = vmatmul.bf16.gmra.mxu0 %v1283
        %v1811 = vpop.f32.mrf.mxu0
        %v1812 = vadd.f32 0.0, %v1811
        %v1813 = vpop.f32.mrf.mxu0
        %v1814 = vadd.f32 0.0, %v1813
        %1815 = vmatmul.bf16.gmra.mxu0 %v1286
        %v1816 = vpop.f32.mrf.mxu0
        %v1817 = vadd.f32 0.0, %v1816
        %v1818 = vpop.f32.mrf.mxu0
        %v1819 = vadd.f32 0.0, %v1818
        %1820 = vmatmul.bf16.gmra.mxu0 %v1289
        %v1821 = vpop.f32.mrf.mxu0
        %v1822 = vadd.f32 0.0, %v1821
        %v1823 = vpop.f32.mrf.mxu0
        %v1824 = vadd.f32 0.0, %v1823
        %1825 = vmatmul.bf16.gmra.mxu0 %v1292
        %v1826 = vpop.f32.mrf.mxu0
        %v1827 = vadd.f32 0.0, %v1826
        %v1828 = vpop.f32.mrf.mxu0
        %v1829 = vadd.f32 0.0, %v1828
        %1830 = vdwg.mxu0
        %v1831 = vadd.f32 %v1761, %v1812
        %v1832 = vadd.f32 %v1762, %v1814
        %v1833 = vadd.f32 %v1763, %v1817
        %v1834 = vadd.f32 %v1764, %v1819
        %v1835 = vadd.f32 %v1765, %v1822
        %v1836 = vadd.f32 %v1766, %v1824
        %v1837 = vadd.f32 %v1767, %v1827
        %v1838 = vadd.f32 %v1768, %v1829
        %s1839 = scalar_lea.vmem %s5, 320
        %v1840 = vld [vmem:[%s1839] sm:$0xf]
        %v1841 = vld [vmem:[%s1839 + $0x4] sm:$0xf]
        %v1842 = vld [vmem:[%s1839 + $0x8] sm:$0xf]
        %v1843 = vld [vmem:[%s1839 + $0xc] sm:$0xf]
        %v1844 = vld [vmem:[%s1839 + $0x10] sm:$0xf]
        %v1845 = vld [vmem:[%s1839 + $0x14] sm:$0xf]
        %v1846 = vld [vmem:[%s1839 + $0x18] sm:$0xf]
        %v1847 = vld [vmem:[%s1839 + $0x1c] sm:$0xf]
        %v1848 = vld [vmem:[%s1839 + $0x20] sm:$0xf]
        %v1849 = vld [vmem:[%s1839 + $0x24] sm:$0xf]
        %v1850 = vld [vmem:[%s1839 + $0x28] sm:$0xf]
        %v1851 = vld [vmem:[%s1839 + $0x2c] sm:$0xf]
        %v1852 = vld [vmem:[%s1839 + $0x30] sm:$0xf]
        %v1853 = vld [vmem:[%s1839 + $0x34] sm:$0xf]
        %v1854 = vld [vmem:[%s1839 + $0x38] sm:$0xf]
        %v1855 = vld [vmem:[%s1839 + $0x3c] sm:$0xf]
        %v1872 = vunpack.c.l.b16 %v1840
        %v1873 = vunpack.c.l.b16 %v1841
        %v1874 = vunpack.c.l.b16 %v1842
        %v1875 = vunpack.c.l.b16 %v1843
        %v1876 = vunpack.c.l.b16 %v1844
        %v1877 = vunpack.c.l.b16 %v1845
        %v1878 = vunpack.c.l.b16 %v1846
        %v1879 = vunpack.c.l.b16 %v1847
        %v1880 = vunpack.c.l.b16 %v1848
        %v1881 = vunpack.c.l.b16 %v1849
        %v1882 = vunpack.c.l.b16 %v1850
        %v1883 = vunpack.c.l.b16 %v1851
        %v1884 = vunpack.c.l.b16 %v1852
        %v1885 = vunpack.c.l.b16 %v1853
        %v1886 = vunpack.c.l.b16 %v1854
        %v1887 = vunpack.c.l.b16 %v1855
        %v1888 = vpack.c.b16 %v1873, %v1872
        %v1889 = vpack.c.b16 %v1875, %v1874
        %v1890 = vpack.c.b16 %v1877, %v1876
        %v1891 = vpack.c.b16 %v1879, %v1878
        %v1892 = vpack.c.b16 %v1881, %v1880
        %v1893 = vpack.c.b16 %v1883, %v1882
        %v1894 = vpack.c.b16 %v1885, %v1884
        %v1895 = vpack.c.b16 %v1887, %v1886
        %1904 = vmatpush.bf16.msra.mxu0 %v1895
        %1905 = vmatpush.bf16.msra.mxu0 %v1894
        %1906 = vmatpush.bf16.msra.mxu0 %v1893
        %1907 = vmatpush.bf16.msra.mxu0 %v1892
        %1908 = vmatpush.bf16.msra.mxu0 %v1891
        %1909 = vmatpush.bf16.msra.mxu0 %v1890
        %1910 = vmatpush.bf16.msra.mxu0 %v1889
        %1911 = vmatpush.bf16.msra.mxu0 %v1888
        %1912 = vmatmul.bf16.gmra.mxu0 %v895
        %v1913 = vpop.f32.mrf.mxu0
        %v1914 = vadd.f32 0.0, %v1913
        %v1915 = vpop.f32.mrf.mxu0
        %v1916 = vadd.f32 0.0, %v1915
        %1917 = vmatmul.bf16.gmra.mxu0 %v896
        %v1918 = vpop.f32.mrf.mxu0
        %v1919 = vadd.f32 0.0, %v1918
        %v1920 = vpop.f32.mrf.mxu0
        %v1921 = vadd.f32 0.0, %v1920
        %1922 = vmatmul.bf16.gmra.mxu0 %v897
        %v1923 = vpop.f32.mrf.mxu0
        %v1924 = vadd.f32 0.0, %v1923
        %v1925 = vpop.f32.mrf.mxu0
        %v1926 = vadd.f32 0.0, %v1925
        %1927 = vmatmul.bf16.gmra.mxu0 %v898
        %v1928 = vpop.f32.mrf.mxu0
        %v1929 = vadd.f32 0.0, %v1928
        %v1930 = vpop.f32.mrf.mxu0
        %v1931 = vadd.f32 0.0, %v1930
        %1932 = vdwg.mxu0
        %v1933 = vadd.f32 %v1831, %v1914
        %v1934 = vadd.f32 %v1832, %v1916
        %v1935 = vadd.f32 %v1833, %v1919
        %v1936 = vadd.f32 %v1834, %v1921
        %v1937 = vadd.f32 %v1835, %v1924
        %v1938 = vadd.f32 %v1836, %v1926
        %v1939 = vadd.f32 %v1837, %v1929
        %v1940 = vadd.f32 %v1838, %v1931
        %v1942 = vsel %vm689, %v1433, 0
        %v1945 = vsel %vm689, %v1434, 0
        %v1948 = vsel %vm689, %v1435, 0
        %v1951 = vsel %vm689, %v1436, 0
        %v1954 = vsel %vm689, %v1437, 0
        %v1957 = vsel %vm689, %v1438, 0
        %v1960 = vsel %vm689, %v1439, 0
        %v1963 = vsel %vm689, %v1440, 0
        %1965 = vmatpush.msra.mxu0 0.0
        %1966 = vmatpush.msra.mxu0 0.0
        %1967 = vmatpush.msra.mxu0 0.0
        %1968 = vmatpush.msra.mxu0 0.0
        %1969 = vmatpush.msra.mxu0 0.0
        %1970 = vmatpush.msra.mxu0 0.0
        %1971 = vmatpush.msra.mxu0 0.0
        %1972 = vmatpush.msra.mxu0 0.0
        %1973 = vmatpush.msra.mxu0 %v1432
        %1974 = vmatpush.msra.mxu0 %v1431
        %1975 = vmatpush.msra.mxu0 %v1430
        %1976 = vmatpush.msra.mxu0 %v1429
        %1977 = vmatpush.msra.mxu0 %v1428
        %1978 = vmatpush.msra.mxu0 %v1427
        %1979 = vmatpush.msra.mxu0 %v1426
        %1980 = vmatpush.msra.mxu0 %v1425
        %1981 = vmatmul.f32.gmra.mxu0 %v1942
        %v1982 = vpop.f32.mrf.mxu0
        %v1983 = vadd.f32 %v1933, %v1982
        %1984 = vmatmul.f32.gmra.mxu0 %v1945
        %v1985 = vpop.f32.mrf.mxu0
        %v1986 = vadd.f32 %v1934, %v1985
        %1987 = vmatmul.f32.gmra.mxu0 %v1948
        %v1988 = vpop.f32.mrf.mxu0
        %v1989 = vadd.f32 %v1935, %v1988
        %1990 = vmatmul.f32.gmra.mxu0 %v1951
        %v1991 = vpop.f32.mrf.mxu0
        %v1992 = vadd.f32 %v1936, %v1991
        %1993 = vmatmul.f32.gmra.mxu0 %v1954
        %v1994 = vpop.f32.mrf.mxu0
        %v1995 = vadd.f32 %v1937, %v1994
        %1996 = vmatmul.f32.gmra.mxu0 %v1957
        %v1997 = vpop.f32.mrf.mxu0
        %v1998 = vadd.f32 %v1938, %v1997
        %1999 = vmatmul.f32.gmra.mxu0 %v1960
        %v2000 = vpop.f32.mrf.mxu0
        %v2001 = vadd.f32 %v1939, %v2000
        %2002 = vmatmul.f32.gmra.mxu0 %v1963
        %v2003 = vpop.f32.mrf.mxu0
        %v2004 = vadd.f32 %v1940, %v2003
        %2005 = vdwg.mxu0
        %s2006 = scalar_lea.vmem %s4, 192
        %v2007 = vld [vmem:[%s2006] sm:$0xf]
        %v2008 = vld [vmem:[%s2006 + $0x4] sm:$0xf]
        %v2009 = vld [vmem:[%s2006 + $0x8] sm:$0xf]
        %v2010 = vld [vmem:[%s2006 + $0xc] sm:$0xf]
        %v2011 = vld [vmem:[%s2006 + $0x10] sm:$0xf]
        %v2012 = vld [vmem:[%s2006 + $0x14] sm:$0xf]
        %v2013 = vld [vmem:[%s2006 + $0x18] sm:$0xf]
        %v2014 = vld [vmem:[%s2006 + $0x1c] sm:$0xf]
        %s2015 = scalar_lea.vmem %s5, 384
        %v2016 = vld [vmem:[%s2015] sm:$0xf]
        %v2017 = vld [vmem:[%s2015 + $0x4] sm:$0xf]
        %v2018 = vld [vmem:[%s2015 + $0x8] sm:$0xf]
        %v2019 = vld [vmem:[%s2015 + $0xc] sm:$0xf]
        %v2020 = vld [vmem:[%s2015 + $0x10] sm:$0xf]
        %v2021 = vld [vmem:[%s2015 + $0x14] sm:$0xf]
        %v2022 = vld [vmem:[%s2015 + $0x18] sm:$0xf]
        %v2023 = vld [vmem:[%s2015 + $0x1c] sm:$0xf]
        %v2024 = vld [vmem:[%s2015 + $0x20] sm:$0xf]
        %v2025 = vld [vmem:[%s2015 + $0x24] sm:$0xf]
        %v2026 = vld [vmem:[%s2015 + $0x28] sm:$0xf]
        %v2027 = vld [vmem:[%s2015 + $0x2c] sm:$0xf]
        %v2028 = vld [vmem:[%s2015 + $0x30] sm:$0xf]
        %v2029 = vld [vmem:[%s2015 + $0x34] sm:$0xf]
        %v2030 = vld [vmem:[%s2015 + $0x38] sm:$0xf]
        %v2031 = vld [vmem:[%s2015 + $0x3c] sm:$0xf]
        %v2048 = vunpack.c.l.b16 %v2016
        %v2049 = vunpack.c.l.b16 %v2017
        %v2050 = vunpack.c.l.b16 %v2018
        %v2051 = vunpack.c.l.b16 %v2019
        %v2052 = vunpack.c.l.b16 %v2020
        %v2053 = vunpack.c.l.b16 %v2021
        %v2054 = vunpack.c.l.b16 %v2022
        %v2055 = vunpack.c.l.b16 %v2023
        %v2056 = vunpack.c.l.b16 %v2024
        %v2057 = vunpack.c.l.b16 %v2025
        %v2058 = vunpack.c.l.b16 %v2026
        %v2059 = vunpack.c.l.b16 %v2027
        %v2060 = vunpack.c.l.b16 %v2028
        %v2061 = vunpack.c.l.b16 %v2029
        %v2062 = vunpack.c.l.b16 %v2030
        %v2063 = vunpack.c.l.b16 %v2031
        %v2064 = vpack.c.b16 %v2049, %v2048
        %v2065 = vpack.c.b16 %v2051, %v2050
        %v2066 = vpack.c.b16 %v2053, %v2052
        %v2067 = vpack.c.b16 %v2055, %v2054
        %v2068 = vpack.c.b16 %v2057, %v2056
        %v2069 = vpack.c.b16 %v2059, %v2058
        %v2070 = vpack.c.b16 %v2061, %v2060
        %v2071 = vpack.c.b16 %v2063, %v2062
        %2080 = vmatpush.bf16.msra.mxu0 %v2071
        %2081 = vmatpush.bf16.msra.mxu0 %v2070
        %2082 = vmatpush.bf16.msra.mxu0 %v2069
        %2083 = vmatpush.bf16.msra.mxu0 %v2068
        %2084 = vmatpush.bf16.msra.mxu0 %v2067
        %2085 = vmatpush.bf16.msra.mxu0 %v2066
        %2086 = vmatpush.bf16.msra.mxu0 %v2065
        %2087 = vmatpush.bf16.msra.mxu0 %v2064
        %2088 = vmatmul.bf16.gmra.mxu0 %v862
        %v2089 = vpop.f32.mrf.mxu0
        %v2090 = vadd.f32 0.0, %v2089
        %v2091 = vpop.f32.mrf.mxu0
        %v2092 = vadd.f32 0.0, %v2091
        %2093 = vmatmul.bf16.gmra.mxu0 %v863
        %v2094 = vpop.f32.mrf.mxu0
        %v2095 = vadd.f32 0.0, %v2094
        %v2096 = vpop.f32.mrf.mxu0
        %v2097 = vadd.f32 0.0, %v2096
        %2098 = vmatmul.bf16.gmra.mxu0 %v864
        %v2099 = vpop.f32.mrf.mxu0
        %v2100 = vadd.f32 0.0, %v2099
        %v2101 = vpop.f32.mrf.mxu0
        %v2102 = vadd.f32 0.0, %v2101
        %2103 = vmatmul.bf16.gmra.mxu0 %v865
        %v2104 = vpop.f32.mrf.mxu0
        %v2105 = vadd.f32 0.0, %v2104
        %v2106 = vpop.f32.mrf.mxu0
        %v2107 = vadd.f32 0.0, %v2106
        %2108 = vdwg.mxu0
        %v2117 = vunpack.c.l.b16 %v2007
        %v2118 = vunpack.c.l.b16 %v2008
        %v2119 = vunpack.c.l.b16 %v2009
        %v2120 = vunpack.c.l.b16 %v2010
        %v2121 = vunpack.c.l.b16 %v2011
        %v2122 = vunpack.c.l.b16 %v2012
        %v2123 = vunpack.c.l.b16 %v2013
        %v2124 = vunpack.c.l.b16 %v2014
        %v2125 = vpack.c.b16 %v2118, %v2117
        %v2126 = vpack.c.b16 %v2120, %v2119
        %v2127 = vpack.c.b16 %v2122, %v2121
        %v2128 = vpack.c.b16 %v2124, %v2123
        %2133 = vmatpush.bf16.msra.mxu0 0
        %2134 = vmatpush.bf16.msra.mxu0 0
        %2135 = vmatpush.bf16.msra.mxu0 0
        %2136 = vmatpush.bf16.msra.mxu0 0
        %2137 = vmatpush.bf16.msra.mxu0 %v2128
        %2138 = vmatpush.bf16.msra.mxu0 %v2127
        %2139 = vmatpush.bf16.msra.mxu0 %v2126
        %2140 = vmatpush.bf16.msra.mxu0 %v2125
        %2141 = vmatmul.bf16.gmra.mxu0 %v1025
        %v2142 = vpop.f32.mrf.mxu0
        %v2143 = vadd.f32 %v2090, %v2142
        %v2144 = vpop.f32.mrf.mxu0
        %v2145 = vadd.f32 %v2092, %v2144
        %2146 = vmatmul.bf16.gmra.mxu0 %v1028
        %v2147 = vpop.f32.mrf.mxu0
        %v2148 = vadd.f32 %v2095, %v2147
        %v2149 = vpop.f32.mrf.mxu0
        %v2150 = vadd.f32 %v2097, %v2149
        %2151 = vmatmul.bf16.gmra.mxu0 %v1031
        %v2152 = vpop.f32.mrf.mxu0
        %v2153 = vadd.f32 %v2100, %v2152
        %v2154 = vpop.f32.mrf.mxu0
        %v2155 = vadd.f32 %v2102, %v2154
        %2156 = vmatmul.bf16.gmra.mxu0 %v1034
        %v2157 = vpop.f32.mrf.mxu0
        %v2158 = vadd.f32 %v2105, %v2157
        %v2159 = vpop.f32.mrf.mxu0
        %v2160 = vadd.f32 %v2107, %v2159
        %2161 = vdwg.mxu0
        %s2162 = scalar_lea.vmem %s4, 224
        %v2163 = vld [vmem:[%s2162] sm:$0xf]
        %v2164 = vld [vmem:[%s2162 + $0x4] sm:$0xf]
        %v2165 = vld [vmem:[%s2162 + $0x8] sm:$0xf]
        %v2166 = vld [vmem:[%s2162 + $0xc] sm:$0xf]
        %v2167 = vld [vmem:[%s2162 + $0x10] sm:$0xf]
        %v2168 = vld [vmem:[%s2162 + $0x14] sm:$0xf]
        %v2169 = vld [vmem:[%s2162 + $0x18] sm:$0xf]
        %v2170 = vld [vmem:[%s2162 + $0x1c] sm:$0xf]
        %v2179 = vunpack.c.l.b16 %v2163
        %v2180 = vunpack.c.l.b16 %v2164
        %v2181 = vunpack.c.l.b16 %v2165
        %v2182 = vunpack.c.l.b16 %v2166
        %v2183 = vunpack.c.l.b16 %v2167
        %v2184 = vunpack.c.l.b16 %v2168
        %v2185 = vunpack.c.l.b16 %v2169
        %v2186 = vunpack.c.l.b16 %v2170
        %v2187 = vpack.c.b16 %v2180, %v2179
        %v2188 = vpack.c.b16 %v2182, %v2181
        %v2189 = vpack.c.b16 %v2184, %v2183
        %v2190 = vpack.c.b16 %v2186, %v2185
        %2195 = vmatpush.bf16.msra.mxu0 0
        %2196 = vmatpush.bf16.msra.mxu0 0
        %2197 = vmatpush.bf16.msra.mxu0 0
        %2198 = vmatpush.bf16.msra.mxu0 0
        %2199 = vmatpush.bf16.msra.mxu0 %v2190
        %2200 = vmatpush.bf16.msra.mxu0 %v2189
        %2201 = vmatpush.bf16.msra.mxu0 %v2188
        %2202 = vmatpush.bf16.msra.mxu0 %v2187
        %2203 = vmatmul.bf16.gmra.mxu0 %v1099
        %v2204 = vpop.f32.mrf.mxu0
        %v2205 = vadd.f32 0.0, %v2204
        %v2206 = vpop.f32.mrf.mxu0
        %v2207 = vadd.f32 0.0, %v2206
        %2208 = vmatmul.bf16.gmra.mxu0 %v1102
        %v2209 = vpop.f32.mrf.mxu0
        %v2210 = vadd.f32 0.0, %v2209
        %v2211 = vpop.f32.mrf.mxu0
        %v2212 = vadd.f32 0.0, %v2211
        %2213 = vmatmul.bf16.gmra.mxu0 %v1105
        %v2214 = vpop.f32.mrf.mxu0
        %v2215 = vadd.f32 0.0, %v2214
        %v2216 = vpop.f32.mrf.mxu0
        %v2217 = vadd.f32 0.0, %v2216
        %2218 = vmatmul.bf16.gmra.mxu0 %v1108
        %v2219 = vpop.f32.mrf.mxu0
        %v2220 = vadd.f32 0.0, %v2219
        %v2221 = vpop.f32.mrf.mxu0
        %v2222 = vadd.f32 0.0, %v2221
        %2223 = vdwg.mxu0
        %v2224 = vadd.f32 %v2143, %v2205
        %v2225 = vadd.f32 %v2145, %v2207
        %v2226 = vadd.f32 %v2148, %v2210
        %v2227 = vadd.f32 %v2150, %v2212
        %v2228 = vadd.f32 %v2153, %v2215
        %v2229 = vadd.f32 %v2155, %v2217
        %v2230 = vadd.f32 %v2158, %v2220
        %v2231 = vadd.f32 %v2160, %v2222
        %s2232 = scalar_lea.vmem %s5, 448
        %v2233 = vld [vmem:[%s2232] sm:$0xf]
        %v2234 = vld [vmem:[%s2232 + $0x4] sm:$0xf]
        %v2235 = vld [vmem:[%s2232 + $0x8] sm:$0xf]
        %v2236 = vld [vmem:[%s2232 + $0xc] sm:$0xf]
        %v2237 = vld [vmem:[%s2232 + $0x10] sm:$0xf]
        %v2238 = vld [vmem:[%s2232 + $0x14] sm:$0xf]
        %v2239 = vld [vmem:[%s2232 + $0x18] sm:$0xf]
        %v2240 = vld [vmem:[%s2232 + $0x1c] sm:$0xf]
        %v2241 = vld [vmem:[%s2232 + $0x20] sm:$0xf]
        %v2242 = vld [vmem:[%s2232 + $0x24] sm:$0xf]
        %v2243 = vld [vmem:[%s2232 + $0x28] sm:$0xf]
        %v2244 = vld [vmem:[%s2232 + $0x2c] sm:$0xf]
        %v2245 = vld [vmem:[%s2232 + $0x30] sm:$0xf]
        %v2246 = vld [vmem:[%s2232 + $0x34] sm:$0xf]
        %v2247 = vld [vmem:[%s2232 + $0x38] sm:$0xf]
        %v2248 = vld [vmem:[%s2232 + $0x3c] sm:$0xf]
        %v2265 = vunpack.c.l.b16 %v2233
        %v2266 = vunpack.c.l.b16 %v2234
        %v2267 = vunpack.c.l.b16 %v2235
        %v2268 = vunpack.c.l.b16 %v2236
        %v2269 = vunpack.c.l.b16 %v2237
        %v2270 = vunpack.c.l.b16 %v2238
        %v2271 = vunpack.c.l.b16 %v2239
        %v2272 = vunpack.c.l.b16 %v2240
        %v2273 = vunpack.c.l.b16 %v2241
        %v2274 = vunpack.c.l.b16 %v2242
        %v2275 = vunpack.c.l.b16 %v2243
        %v2276 = vunpack.c.l.b16 %v2244
        %v2277 = vunpack.c.l.b16 %v2245
        %v2278 = vunpack.c.l.b16 %v2246
        %v2279 = vunpack.c.l.b16 %v2247
        %v2280 = vunpack.c.l.b16 %v2248
        %v2281 = vpack.c.b16 %v2266, %v2265
        %v2282 = vpack.c.b16 %v2268, %v2267
        %v2283 = vpack.c.b16 %v2270, %v2269
        %v2284 = vpack.c.b16 %v2272, %v2271
        %v2285 = vpack.c.b16 %v2274, %v2273
        %v2286 = vpack.c.b16 %v2276, %v2275
        %v2287 = vpack.c.b16 %v2278, %v2277
        %v2288 = vpack.c.b16 %v2280, %v2279
        %2297 = vmatpush.bf16.msra.mxu0 %v2288
        %2298 = vmatpush.bf16.msra.mxu0 %v2287
        %2299 = vmatpush.bf16.msra.mxu0 %v2286
        %2300 = vmatpush.bf16.msra.mxu0 %v2285
        %2301 = vmatpush.bf16.msra.mxu0 %v2284
        %2302 = vmatpush.bf16.msra.mxu0 %v2283
        %2303 = vmatpush.bf16.msra.mxu0 %v2282
        %2304 = vmatpush.bf16.msra.mxu0 %v2281
        %2305 = vmatmul.bf16.gmra.mxu0 %v825
        %v2306 = vpop.f32.mrf.mxu0
        %v2307 = vadd.f32 0.0, %v2306
        %v2308 = vpop.f32.mrf.mxu0
        %v2309 = vadd.f32 0.0, %v2308
        %2310 = vmatmul.bf16.gmra.mxu0 %v826
        %v2311 = vpop.f32.mrf.mxu0
        %v2312 = vadd.f32 0.0, %v2311
        %v2313 = vpop.f32.mrf.mxu0
        %v2314 = vadd.f32 0.0, %v2313
        %2315 = vmatmul.bf16.gmra.mxu0 %v827
        %v2316 = vpop.f32.mrf.mxu0
        %v2317 = vadd.f32 0.0, %v2316
        %v2318 = vpop.f32.mrf.mxu0
        %v2319 = vadd.f32 0.0, %v2318
        %2320 = vmatmul.bf16.gmra.mxu0 %v828
        %v2321 = vpop.f32.mrf.mxu0
        %v2322 = vadd.f32 0.0, %v2321
        %v2323 = vpop.f32.mrf.mxu0
        %v2324 = vadd.f32 0.0, %v2323
        %2325 = vdwg.mxu0
        %v2326 = vadd.f32 %v2224, %v2307
        %v2327 = vadd.f32 %v2225, %v2309
        %v2328 = vadd.f32 %v2226, %v2312
        %v2329 = vadd.f32 %v2227, %v2314
        %v2330 = vadd.f32 %v2228, %v2317
        %v2331 = vadd.f32 %v2229, %v2319
        %v2332 = vadd.f32 %v2230, %v2322
        %v2333 = vadd.f32 %v2231, %v2324
        %s2334 = scalar_lea.vmem %s4, 256
        %v2335 = vld [vmem:[%s2334] sm:$0xf]
        %v2336 = vld [vmem:[%s2334 + $0x4] sm:$0xf]
        %v2337 = vld [vmem:[%s2334 + $0x8] sm:$0xf]
        %v2338 = vld [vmem:[%s2334 + $0xc] sm:$0xf]
        %v2339 = vld [vmem:[%s2334 + $0x10] sm:$0xf]
        %v2340 = vld [vmem:[%s2334 + $0x14] sm:$0xf]
        %v2341 = vld [vmem:[%s2334 + $0x18] sm:$0xf]
        %v2342 = vld [vmem:[%s2334 + $0x1c] sm:$0xf]
        %v2351 = vunpack.c.l.b16 %v2335
        %v2352 = vunpack.c.l.b16 %v2336
        %v2353 = vunpack.c.l.b16 %v2337
        %v2354 = vunpack.c.l.b16 %v2338
        %v2355 = vunpack.c.l.b16 %v2339
        %v2356 = vunpack.c.l.b16 %v2340
        %v2357 = vunpack.c.l.b16 %v2341
        %v2358 = vunpack.c.l.b16 %v2342
        %v2359 = vpack.c.b16 %v2352, %v2351
        %v2360 = vpack.c.b16 %v2354, %v2353
        %v2361 = vpack.c.b16 %v2356, %v2355
        %v2362 = vpack.c.b16 %v2358, %v2357
        %2367 = vmatpush.bf16.msra.mxu0 0
        %2368 = vmatpush.bf16.msra.mxu0 0
        %2369 = vmatpush.bf16.msra.mxu0 0
        %2370 = vmatpush.bf16.msra.mxu0 0
        %2371 = vmatpush.bf16.msra.mxu0 %v2362
        %2372 = vmatpush.bf16.msra.mxu0 %v2361
        %2373 = vmatpush.bf16.msra.mxu0 %v2360
        %2374 = vmatpush.bf16.msra.mxu0 %v2359
        %2375 = vmatmul.bf16.gmra.mxu0 %v1283
        %v2376 = vpop.f32.mrf.mxu0
        %v2377 = vadd.f32 0.0, %v2376
        %v2378 = vpop.f32.mrf.mxu0
        %v2379 = vadd.f32 0.0, %v2378
        %2380 = vmatmul.bf16.gmra.mxu0 %v1286
        %v2381 = vpop.f32.mrf.mxu0
        %v2382 = vadd.f32 0.0, %v2381
        %v2383 = vpop.f32.mrf.mxu0
        %v2384 = vadd.f32 0.0, %v2383
        %2385 = vmatmul.bf16.gmra.mxu0 %v1289
        %v2386 = vpop.f32.mrf.mxu0
        %v2387 = vadd.f32 0.0, %v2386
        %v2388 = vpop.f32.mrf.mxu0
        %v2389 = vadd.f32 0.0, %v2388
        %2390 = vmatmul.bf16.gmra.mxu0 %v1292
        %v2391 = vpop.f32.mrf.mxu0
        %v2392 = vadd.f32 0.0, %v2391
        %v2393 = vpop.f32.mrf.mxu0
        %v2394 = vadd.f32 0.0, %v2393
        %2395 = vdwg.mxu0
        %v2396 = vadd.f32 %v2326, %v2377
        %v2397 = vadd.f32 %v2327, %v2379
        %v2398 = vadd.f32 %v2328, %v2382
        %v2399 = vadd.f32 %v2329, %v2384
        %v2400 = vadd.f32 %v2330, %v2387
        %v2401 = vadd.f32 %v2331, %v2389
        %v2402 = vadd.f32 %v2332, %v2392
        %v2403 = vadd.f32 %v2333, %v2394
        %s2404 = scalar_lea.vmem %s5, 512
        %v2405 = vld [vmem:[%s2404] sm:$0xf]
        %v2406 = vld [vmem:[%s2404 + $0x4] sm:$0xf]
        %v2407 = vld [vmem:[%s2404 + $0x8] sm:$0xf]
        %v2408 = vld [vmem:[%s2404 + $0xc] sm:$0xf]
        %v2409 = vld [vmem:[%s2404 + $0x10] sm:$0xf]
        %v2410 = vld [vmem:[%s2404 + $0x14] sm:$0xf]
        %v2411 = vld [vmem:[%s2404 + $0x18] sm:$0xf]
        %v2412 = vld [vmem:[%s2404 + $0x1c] sm:$0xf]
        %v2413 = vld [vmem:[%s2404 + $0x20] sm:$0xf]
        %v2414 = vld [vmem:[%s2404 + $0x24] sm:$0xf]
        %v2415 = vld [vmem:[%s2404 + $0x28] sm:$0xf]
        %v2416 = vld [vmem:[%s2404 + $0x2c] sm:$0xf]
        %v2417 = vld [vmem:[%s2404 + $0x30] sm:$0xf]
        %v2418 = vld [vmem:[%s2404 + $0x34] sm:$0xf]
        %v2419 = vld [vmem:[%s2404 + $0x38] sm:$0xf]
        %v2420 = vld [vmem:[%s2404 + $0x3c] sm:$0xf]
        %v2437 = vunpack.c.l.b16 %v2405
        %v2438 = vunpack.c.l.b16 %v2406
        %v2439 = vunpack.c.l.b16 %v2407
        %v2440 = vunpack.c.l.b16 %v2408
        %v2441 = vunpack.c.l.b16 %v2409
        %v2442 = vunpack.c.l.b16 %v2410
        %v2443 = vunpack.c.l.b16 %v2411
        %v2444 = vunpack.c.l.b16 %v2412
        %v2445 = vunpack.c.l.b16 %v2413
        %v2446 = vunpack.c.l.b16 %v2414
        %v2447 = vunpack.c.l.b16 %v2415
        %v2448 = vunpack.c.l.b16 %v2416
        %v2449 = vunpack.c.l.b16 %v2417
        %v2450 = vunpack.c.l.b16 %v2418
        %v2451 = vunpack.c.l.b16 %v2419
        %v2452 = vunpack.c.l.b16 %v2420
        %v2453 = vpack.c.b16 %v2438, %v2437
        %v2454 = vpack.c.b16 %v2440, %v2439
        %v2455 = vpack.c.b16 %v2442, %v2441
        %v2456 = vpack.c.b16 %v2444, %v2443
        %v2457 = vpack.c.b16 %v2446, %v2445
        %v2458 = vpack.c.b16 %v2448, %v2447
        %v2459 = vpack.c.b16 %v2450, %v2449
        %v2460 = vpack.c.b16 %v2452, %v2451
        %2469 = vmatpush.bf16.msra.mxu0 %v2460
        %2470 = vmatpush.bf16.msra.mxu0 %v2459
        %2471 = vmatpush.bf16.msra.mxu0 %v2458
        %2472 = vmatpush.bf16.msra.mxu0 %v2457
        %2473 = vmatpush.bf16.msra.mxu0 %v2456
        %2474 = vmatpush.bf16.msra.mxu0 %v2455
        %2475 = vmatpush.bf16.msra.mxu0 %v2454
        %2476 = vmatpush.bf16.msra.mxu0 %v2453
        %2477 = vmatmul.bf16.gmra.mxu0 %v895
        %v2478 = vpop.f32.mrf.mxu0
        %v2479 = vadd.f32 0.0, %v2478
        %v2480 = vpop.f32.mrf.mxu0
        %v2481 = vadd.f32 0.0, %v2480
        %2482 = vmatmul.bf16.gmra.mxu0 %v896
        %v2483 = vpop.f32.mrf.mxu0
        %v2484 = vadd.f32 0.0, %v2483
        %v2485 = vpop.f32.mrf.mxu0
        %v2486 = vadd.f32 0.0, %v2485
        %2487 = vmatmul.bf16.gmra.mxu0 %v897
        %v2488 = vpop.f32.mrf.mxu0
        %v2489 = vadd.f32 0.0, %v2488
        %v2490 = vpop.f32.mrf.mxu0
        %v2491 = vadd.f32 0.0, %v2490
        %2492 = vmatmul.bf16.gmra.mxu0 %v898
        %v2493 = vpop.f32.mrf.mxu0
        %v2494 = vadd.f32 0.0, %v2493
        %v2495 = vpop.f32.mrf.mxu0
        %v2496 = vadd.f32 0.0, %v2495
        %2497 = vdwg.mxu0
        %v2498 = vadd.f32 %v2396, %v2479
        %v2499 = vadd.f32 %v2397, %v2481
        %v2500 = vadd.f32 %v2398, %v2484
        %v2501 = vadd.f32 %v2399, %v2486
        %v2502 = vadd.f32 %v2400, %v2489
        %v2503 = vadd.f32 %v2401, %v2491
        %v2504 = vadd.f32 %v2402, %v2494
        %v2505 = vadd.f32 %v2403, %v2496
        %s2506 = scalar_lea.vmem %s7, 64
        %v2507 = vld [vmem:[%s2506] sm:$0xff]
        %v2508 = vld [vmem:[%s2506 + $0x8] sm:$0xff]
        %v2509 = vld [vmem:[%s2506 + $0x10] sm:$0xff]
        %v2510 = vld [vmem:[%s2506 + $0x18] sm:$0xff]
        %v2511 = vld [vmem:[%s2506 + $0x20] sm:$0xff]
        %v2512 = vld [vmem:[%s2506 + $0x28] sm:$0xff]
        %v2513 = vld [vmem:[%s2506 + $0x30] sm:$0xff]
        %v2514 = vld [vmem:[%s2506 + $0x38] sm:$0xff]
        %v2516 = vsel %vm689, %v2507, 0
        %v2519 = vsel %vm689, %v2508, 0
        %v2522 = vsel %vm689, %v2509, 0
        %v2525 = vsel %vm689, %v2510, 0
        %v2528 = vsel %vm689, %v2511, 0
        %v2531 = vsel %vm689, %v2512, 0
        %v2534 = vsel %vm689, %v2513, 0
        %v2537 = vsel %vm689, %v2514, 0
        %2539 = vmatpush.msra.mxu0 0.0
        %2540 = vmatpush.msra.mxu0 0.0
        %2541 = vmatpush.msra.mxu0 0.0
        %2542 = vmatpush.msra.mxu0 0.0
        %2543 = vmatpush.msra.mxu0 0.0
        %2544 = vmatpush.msra.mxu0 0.0
        %2545 = vmatpush.msra.mxu0 0.0
        %2546 = vmatpush.msra.mxu0 0.0
        %2547 = vmatpush.msra.mxu0 %v2505
        %2548 = vmatpush.msra.mxu0 %v2504
        %2549 = vmatpush.msra.mxu0 %v2503
        %2550 = vmatpush.msra.mxu0 %v2502
        %2551 = vmatpush.msra.mxu0 %v2501
        %2552 = vmatpush.msra.mxu0 %v2500
        %2553 = vmatpush.msra.mxu0 %v2499
        %2554 = vmatpush.msra.mxu0 %v2498
        %2555 = vmatmul.f32.gmra.mxu0 %v2516
        %v2556 = vpop.f32.mrf.mxu0
        %v2557 = vadd.f32 0.0, %v2556
        %2558 = vmatmul.f32.gmra.mxu0 %v2519
        %v2559 = vpop.f32.mrf.mxu0
        %v2560 = vadd.f32 0.0, %v2559
        %2561 = vmatmul.f32.gmra.mxu0 %v2522
        %v2562 = vpop.f32.mrf.mxu0
        %v2563 = vadd.f32 0.0, %v2562
        %2564 = vmatmul.f32.gmra.mxu0 %v2525
        %v2565 = vpop.f32.mrf.mxu0
        %v2566 = vadd.f32 0.0, %v2565
        %2567 = vmatmul.f32.gmra.mxu0 %v2528
        %v2568 = vpop.f32.mrf.mxu0
        %v2569 = vadd.f32 0.0, %v2568
        %2570 = vmatmul.f32.gmra.mxu0 %v2531
        %v2571 = vpop.f32.mrf.mxu0
        %v2572 = vadd.f32 0.0, %v2571
        %2573 = vmatmul.f32.gmra.mxu0 %v2534
        %v2574 = vpop.f32.mrf.mxu0
        %v2575 = vadd.f32 0.0, %v2574
        %2576 = vmatmul.f32.gmra.mxu0 %v2537
        %v2577 = vpop.f32.mrf.mxu0
        %v2578 = vadd.f32 0.0, %v2577
        %2579 = vdwg.mxu0
        %v2580 = vadd.f32 %v1983, %v2557
        %v2581 = vadd.f32 %v1986, %v2560
        %v2582 = vadd.f32 %v1989, %v2563
        %v2583 = vadd.f32 %v1992, %v2566
        %v2584 = vadd.f32 %v1995, %v2569
        %v2585 = vadd.f32 %v1998, %v2572
        %v2586 = vadd.f32 %v2001, %v2575
        %v2587 = vadd.f32 %v2004, %v2578
        %v2588 = vld [vmem:[%s9] sm:$0x1]
        %v2590 = vperm.slane %v2588, 0
        %v2592 = vadd.f32 %v2580, %v2590
        %v2593 = vadd.f32 %v2581, %v2590
        %v2594 = vadd.f32 %v2582, %v2590
        %v2595 = vadd.f32 %v2583, %v2590
        %v2596 = vadd.f32 %v2584, %v2590
        %v2597 = vadd.f32 %v2585, %v2590
        %v2598 = vadd.f32 %v2586, %v2590
        %v2599 = vadd.f32 %v2587, %v2590
        %v2600 = vmax.f32 %v2592, 0.0
        %v2601 = vmax.f32 %v2593, 0.0
        %v2602 = vmax.f32 %v2594, 0.0
        %v2603 = vmax.f32 %v2595, 0.0
        %v2604 = vmax.f32 %v2596, 0.0
        %v2605 = vmax.f32 %v2597, 0.0
        %v2606 = vmax.f32 %v2598, 0.0
        %v2607 = vmax.f32 %v2599, 0.0
        %2608 = vst [vmem:[%s367] sm:$0xff] %v2600
        %2609 = vst [vmem:[%s367 + $0x8] sm:$0xff] %v2601
        %2610 = vst [vmem:[%s367 + $0x10] sm:$0xff] %v2602
        %2611 = vst [vmem:[%s367 + $0x18] sm:$0xff] %v2603
        %2612 = vst [vmem:[%s367 + $0x20] sm:$0xff] %v2604
        %2613 = vst [vmem:[%s367 + $0x28] sm:$0xff] %v2605
        %2614 = vst [vmem:[%s367 + $0x30] sm:$0xff] %v2606
        %2615 = vst [vmem:[%s367 + $0x38] sm:$0xff] %v2607
        %s2616 = sand.u32 %s252, 1
        %s2617 = scalar_lea.sflag [#allocation3], %s2616
        %s2618 = sand.u32 %s252, 1
        %s2619 = smul.addr %s2618, 64
        %s2620 = scalar_lea.vmem [#allocation2], %s2619
        // Predicated region
        $region61: #{passthrough_forward.1} parent=59 // pred_check
          %p2621 = pneg %p262
        $region62: #{passthrough_forward.1} parent=59 // pred_check_branch
          %2623 = sbr.rel (%p2621) target = $region64
        $region63: #{passthrough_forward.1} parent=59 // pred_region
          %2625 = vsyncadd %s2617, 0
          %s2626 = smul.addr %s24, 8
          %s2627 = smul.addr %s2626, 8
          %s2628 = scalar_lea.hbm %s10, %s2627
          %s2629 = sshll.u32 %s2620, 4
          %s2630 = int_to_ptr.vmem [resolvable:$true] %s2629
          %s2631 = sshll.u32 %s2628, 4
          %s2632 = int_to_ptr.hbm [resolvable:$true] %s2631
          %2637 = dma.vmem_to_hbm [thread:$0]  %s2630, 1024, %s2632, %s2617, 128, 128, 8
        $region64: #{passthrough_forward.1} parent=59 // pred_fallthru
          _
      $region60: #{passthrough_forward.1} parent=5 // pred_fallthru
        _
      %p2638 = scmp.le.s32.totalorder 2, %s19
      // Predicated region
      $region65: #{passthrough_forward.1} parent=5 // pred_check
        %p2639 = pneg %p2638
      $region66: #{passthrough_forward.1} parent=5 // pred_check_branch
        %2641 = sbr.rel (%p2639) target = $region68
      $region67: #{passthrough_forward.1} parent=5 // pred_region
        %s2642 = ssub.s32 %s19, 2
        // Predicated region
        $region69: #{passthrough_forward.1} parent=67 // pred_check
          %p2643 = pneg %p268
        $region70: #{passthrough_forward.1} parent=67 // pred_check_branch
          %2645 = sbr.rel (%p2643) target = $region72
        $region71: #{passthrough_forward.1} parent=67 // pred_region
          %s2646 = sand.u32 %s253, 1
          %s2647 = scalar_lea.sflag [#allocation3], %s2646
          %s2648 = sand.u32 %s253, 1
          %s2649 = smul.addr %s2648, 64
          %s2650 = scalar_lea.vmem [#allocation2], %s2649
          %2652 = dma.done %s2647, 1024
        $region72: #{passthrough_forward.1} parent=67 // pred_fallthru
          _
      $region68: #{passthrough_forward.1} parent=5 // pred_fallthru
        _
    $region6: #{passthrough_forward.1} parent=1 // loop_footer
      %s23 = sadd.s32 1, %s19
    $region7: #{passthrough_forward.1} parent=1 // loop_footer_branch
      %18 = sbr.rel target = $region3
    $region8: #{passthrough_forward.1} parent=1 // loop_exit
      _
    %2653 = vsyncpa [#allocation3], 1
    %s2654 = scalar_lea.sflag [#allocation3], 1
    %2655 = vsyncpa %s2654, 1

</llo_original>
